<compile_context>
chip_gen: v7x
topology: tpu7x:2x2x1
jax: 0.10.0
libtpu: 0.0.40
codegen_flags: <defaults>
</compile_context>

<pallas_src>
import jax
import jax.numpy as jnp
from jax.experimental import pallas as pl
from jax.experimental.pallas import tpu as pltpu

LN_EPS = 1e-5


def _layernorm(x, gamma, beta):
    # PyTorch LayerNorm: biased variance over last dim.
    mu = jnp.mean(x, axis=-1, keepdims=True)
    var = jnp.mean((x - mu) ** 2, axis=-1, keepdims=True)
    return (x - mu) * jax.lax.rsqrt(var + LN_EPS) * gamma + beta


def mixer_block_kernel(x_ref,
                       g1_ref, be1_ref, w1_ref, b1_ref, w2_ref, b2_ref,
                       g2_ref, be2_ref, w3_ref, b3_ref, w4_ref, b4_ref,
                       o_ref, x1_ref):
    f32 = jnp.float32
    bf16 = jnp.bfloat16

    x = x_ref[...].astype(f32)                       # (Bb, P, C)
    Bb, P, C = x.shape

    # ---------------- token mix ----------------
    # LN over the whole (Bb, P, C) block at once, then cast once to bf16.
    xn = _layernorm(x, g1_ref[...], be1_ref[...]).astype(bf16)   # (Bb, P, C)
    b1 = b1_ref[...]                                 # (T, 1) f32, lane-broadcast
    b2 = b2_ref[...]                                 # (P, 1) f32

    # Static unroll over the (small) batch block. Weights are in torch (out,in)
    # layout so no activation transpose is needed: results land in (., C) with
    # C on the lane axis, exactly the layout of the residual.
    for b in range(Bb):
        h = jnp.dot(w1_ref[...], xn[b],
                    preferred_element_type=f32)      # (T, P) @ (P, C) -> (T, C)
        h = jnp.maximum(h + b1, 0.0).astype(bf16)    # ReLU, fused bias epilogue
        t = jnp.dot(w2_ref[...], h,
                    preferred_element_type=f32) + b2  # (P, T) @ (T, C) -> (P, C)
        x1_ref[b] = x[b] + t                         # residual (f32 scratch)

    x1 = x1_ref[...]                                 # (Bb, P, C) f32

    # ---------------- channel mix ----------------
    zn = _layernorm(x1, g2_ref[...], be2_ref[...]).astype(bf16)  # (Bb, P, C)
    zn2 = zn.reshape(Bb * P, C)                      # fold batch into GEMM M (free)
    h2 = jnp.dot(zn2, w3_ref[...],
                 preferred_element_type=f32)         # (Bb*P, C) @ (C, cd)
    h2 = jnp.maximum(h2 + b3_ref[...], 0.0).astype(bf16)
    c = jnp.dot(h2, w4_ref[...],
                preferred_element_type=f32) + b4_ref[...]        # (Bb*P, C)
    o_ref[...] = (x1 + c.reshape(Bb, P, C)).astype(o_ref.dtype)


def mixer_block(x, params, *, b_blk=2):
    """x: (B, P, C) float32. params: dict (see init_params for layouts)."""
    B, P, C = x.shape
    T = params["w1"].shape[0]        # w1: (T, P)  torch (out, in)
    cd = params["w3"].shape[1]       # w3: (C, cd) torch weight transposed

    if B % b_blk != 0:
        b_blk = 1                    # fallback for odd batch sizes

    bf16 = jnp.bfloat16
    w1 = params["w1"].astype(bf16)   # (T, P)
    w2 = params["w2"].astype(bf16)   # (P, T)
    w3 = params["w3"].astype(bf16)   # (C, cd)
    w4 = params["w4"].astype(bf16)   # (cd, C)

    def rep(shape):
        # Constant-index parameter block (whole array, reused every grid step).
        nd = len(shape)
        return pl.BlockSpec(shape, lambda i, _n=nd: (0,) * _n)

    grid_spec = pltpu.PrefetchScalarGridSpec(
        num_scalar_prefetch=0,
        grid=(B // b_blk,),
        in_specs=[
            pl.BlockSpec((b_blk, P, C), lambda i: (i, 0, 0)),   # x
            rep((1, C)),    # gamma1
            rep((1, C)),    # beta1
            rep((T, P)),    # W1 (token mix, torch (out,in) layout)
            rep((T, 1)),    # b1 (column)
            rep((P, T)),    # W2
            rep((P, 1)),    # b2 (column)
            rep((1, C)),    # gamma2
            rep((1, C)),    # beta2
            rep((C, cd)),   # W3 (channel mix, (in,out))
            rep((1, cd)),   # b3 (row)
            rep((cd, C)),   # W4
            rep((1, C)),    # b4 (row)
        ],
        out_specs=pl.BlockSpec((b_blk, P, C), lambda i: (i, 0, 0)),
        scratch_shapes=[pltpu.VMEM((b_blk, P, C), jnp.float32)],  # post-token-mix x
    )

    return pl.pallas_call(
        mixer_block_kernel,
        out_shape=jax.ShapeDtypeStruct((B, P, C), x.dtype),
        grid_spec=grid_spec,
        compiler_params=pltpu.CompilerParams(
            dimension_semantics=("parallel",),
            vmem_limit_bytes=32 * 1024 * 1024),
    )(x,
      params["g1"], params["be1"], w1, params["b1"], w2, params["b2"],
      params["g2"], params["be2"], w3, params["b3"], w4, params["b4"])


def mixer_block_ref(x, params):
    """Plain-JAX reference mirroring the PyTorch forward (f32 throughout)."""
    xn = _layernorm(x, params["g1"][0], params["be1"][0])
    y = jnp.swapaxes(xn, 1, 2)                                     # (B, C, P)
    h = jnp.maximum(y @ params["w1"].T + params["b1"][:, 0], 0.0)  # (B, C, T)
    t = h @ params["w2"].T + params["b2"][:, 0]                    # (B, C, P)
    x = x + jnp.swapaxes(t, 1, 2)
    zn = _layernorm(x, params["g2"][0], params["be2"][0])
    h2 = jnp.maximum(zn @ params["w3"] + params["b3"][0], 0.0)
    c = h2 @ params["w4"] + params["b4"][0]
    return x + c


def init_params(key, num_channels, num_patch, token_dim, channel_dim):
    C, P, T, D = num_channels, num_patch, token_dim, channel_dim
    ks = jax.random.split(key, 8)

    def u(k, shape, fan_in):
        s = 1.0 / jnp.sqrt(fan_in)
        return jax.random.uniform(k, shape, jnp.float32, -s, s)

    return {
        # LayerNorm params (PyTorch default init: weight=1, bias=0)
        "g1": jnp.ones((1, C), jnp.float32), "be1": jnp.zeros((1, C), jnp.float32),
        "g2": jnp.ones((1, C), jnp.float32), "be2": jnp.zeros((1, C), jnp.float32),
        # token-mix FeedForward: Linear(P->T), Linear(T->P)
        # weights kept in torch (out, in) layout; biases as columns
        "w1": u(ks[0], (T, P), P), "b1": u(ks[1], (T, 1), P),
        "w2": u(ks[2], (P, T), T), "b2": u(ks[3], (P, 1), T),
        # channel-mix FeedForward: Linear(C->D), Linear(D->C)
        # weights stored as (in, out) = torch weight.T; biases as rows
        "w3": u(ks[4], (C, D), C), "b3": u(ks[5], (1, D), C),
        "w4": u(ks[6], (D, C), D), "b4": u(ks[7], (1, C), D),
    }


if __name__ == "__main__":
    # Small but lane-friendly shapes: C (last dim) is a multiple of 128 so
    # loads/stores are lane-dense; P is a multiple of 8 (sublane-aligned).
    B, P, C = 4, 64, 128                 # batch, num_patch, num_channels
    token_dim, channel_dim = 64, 256

    key = jax.random.PRNGKey(0)
    kx, kp = jax.random.split(key)
    x = jax.random.normal(kx, (B, P, C), jnp.float32)
    params = init_params(kp, C, P, token_dim, channel_dim)

    out = jax.block_until_ready(mixer_block(x, params, b_blk=2))

    ref = mixer_block_ref(x, params)
    assert out.shape == (B, P, C) and out.dtype == jnp.float32
    max_err = float(jnp.max(jnp.abs(out - ref)))
    # bf16 GEMM operands with f32 accumulation -> loosened tolerance vs f32 ref.
    assert jnp.allclose(out, ref, atol=3e-2, rtol=3e-2), (
        f"mismatch vs JAX reference, max|err|={max_err}")
    print("KERNEL_OK")
</pallas_src>

<mosaic_0001>
module attributes {stable_mosaic.version = 11 : i64} {
  func.func @mixer_block_kernel(%arg0: i32, %arg1: memref<2x64x128xf32, #tpu.memory_space<vmem>>, %arg2: memref<1x128xf32, #tpu.memory_space<vmem>>, %arg3: memref<1x128xf32, #tpu.memory_space<vmem>>, %arg4: memref<64x64xbf16, #tpu.memory_space<vmem>>, %arg5: memref<64x1xf32, #tpu.memory_space<vmem>>, %arg6: memref<64x64xbf16, #tpu.memory_space<vmem>>, %arg7: memref<64x1xf32, #tpu.memory_space<vmem>>, %arg8: memref<1x128xf32, #tpu.memory_space<vmem>>, %arg9: memref<1x128xf32, #tpu.memory_space<vmem>>, %arg10: memref<128x256xbf16, #tpu.memory_space<vmem>>, %arg11: memref<1x256xf32, #tpu.memory_space<vmem>>, %arg12: memref<256x128xbf16, #tpu.memory_space<vmem>>, %arg13: memref<1x128xf32, #tpu.memory_space<vmem>>, %arg14: memref<2x64x128xf32, #tpu.memory_space<vmem>>, %arg15: memref<2x64x128xf32, #tpu.memory_space<vmem>>) attributes {dimension_semantics = [#tpu.dimension_semantics<parallel>], iteration_bounds = array<i64: 2>, scalar_prefetch = 0 : i64, scratch_operands = 1 : i64, tpu.core_type = #tpu.core_type<tc>, window_params = [{transform_indices = @transform_0, window_bounds = array<i64: 2, 64, 128>}, {pipeline_mode = #tpu.pipeline_mode<synchronous>, transform_indices = @transform_1, window_bounds = array<i64: 1, 128>}, {pipeline_mode = #tpu.pipeline_mode<synchronous>, transform_indices = @transform_2, window_bounds = array<i64: 1, 128>}, {pipeline_mode = #tpu.pipeline_mode<synchronous>, transform_indices = @transform_3, window_bounds = array<i64: 64, 64>}, {pipeline_mode = #tpu.pipeline_mode<synchronous>, transform_indices = @transform_4, window_bounds = array<i64: 64, 1>}, {pipeline_mode = #tpu.pipeline_mode<synchronous>, transform_indices = @transform_5, window_bounds = array<i64: 64, 64>}, {pipeline_mode = #tpu.pipeline_mode<synchronous>, transform_indices = @transform_6, window_bounds = array<i64: 64, 1>}, {pipeline_mode = #tpu.pipeline_mode<synchronous>, transform_indices = @transform_7, window_bounds = array<i64: 1, 128>}, {pipeline_mode = #tpu.pipeline_mode<synchronous>, transform_indices = @transform_8, window_bounds = array<i64: 1, 128>}, {pipeline_mode = #tpu.pipeline_mode<synchronous>, transform_indices = @transform_9, window_bounds = array<i64: 128, 256>}, {pipeline_mode = #tpu.pipeline_mode<synchronous>, transform_indices = @transform_10, window_bounds = array<i64: 1, 256>}, {pipeline_mode = #tpu.pipeline_mode<synchronous>, transform_indices = @transform_11, window_bounds = array<i64: 256, 128>}, {pipeline_mode = #tpu.pipeline_mode<synchronous>, transform_indices = @transform_12, window_bounds = array<i64: 1, 128>}, {transform_indices = @transform_13, window_bounds = array<i64: 2, 64, 128>}]} {
    %c0 = arith.constant 0 : index
    %c0_0 = arith.constant 0 : index
    %c0_1 = arith.constant 0 : index
    %0 = vector.load %arg1[%c0, %c0_0, %c0_1] : memref<2x64x128xf32, #tpu.memory_space<vmem>>, vector<2x64x128xf32>
    %c0_2 = arith.constant 0 : index
    %c0_3 = arith.constant 0 : index
    %1 = vector.load %arg2[%c0_2, %c0_3] : memref<1x128xf32, #tpu.memory_space<vmem>>, vector<1x128xf32>
    %c0_4 = arith.constant 0 : index
    %c0_5 = arith.constant 0 : index
    %2 = vector.load %arg3[%c0_4, %c0_5] : memref<1x128xf32, #tpu.memory_space<vmem>>, vector<1x128xf32>
    %cst = arith.constant dense<0.000000e+00> : vector<2x64xf32>
    %3 = vector.multi_reduction <add>, %0, %cst [2] : vector<2x64x128xf32> to vector<2x64xf32>
    %4 = vector.shape_cast %3 : vector<2x64xf32> to vector<2x64x1xf32>
    %cst_6 = arith.constant 1.280000e+02 : f32
    %5 = vector.broadcast %cst_6 : f32 to vector<2x64x1xf32>
    %6 = arith.divf %4, %5 : vector<2x64x1xf32>
    %7 = vector.broadcast %6 : vector<2x64x1xf32> to vector<2x64x128xf32>
    %8 = arith.subf %0, %7 : vector<2x64x128xf32>
    %9 = arith.mulf %8, %8 : vector<2x64x128xf32>
    %cst_7 = arith.constant dense<0.000000e+00> : vector<2x64xf32>
    %10 = vector.multi_reduction <add>, %9, %cst_7 [2] : vector<2x64x128xf32> to vector<2x64xf32>
    %11 = vector.shape_cast %10 : vector<2x64xf32> to vector<2x64x1xf32>
    %cst_8 = arith.constant 1.280000e+02 : f32
    %12 = vector.broadcast %cst_8 : f32 to vector<2x64x1xf32>
    %13 = arith.divf %11, %12 : vector<2x64x1xf32>
    %14 = vector.broadcast %6 : vector<2x64x1xf32> to vector<2x64x128xf32>
    %15 = arith.subf %0, %14 : vector<2x64x128xf32>
    %cst_9 = arith.constant 9.99999974E-6 : f32
    %16 = vector.broadcast %cst_9 : f32 to vector<2x64x1xf32>
    %17 = arith.addf %13, %16 : vector<2x64x1xf32>
    %18 = math.rsqrt %17 : vector<2x64x1xf32>
    %19 = vector.broadcast %18 : vector<2x64x1xf32> to vector<2x64x128xf32>
    %20 = arith.mulf %15, %19 : vector<2x64x128xf32>
    %21 = vector.shape_cast %1 : vector<1x128xf32> to vector<1x1x128xf32>
    %22 = vector.broadcast %21 : vector<1x1x128xf32> to vector<2x64x128xf32>
    %23 = arith.mulf %20, %22 : vector<2x64x128xf32>
    %24 = vector.shape_cast %2 : vector<1x128xf32> to vector<1x1x128xf32>
    %25 = vector.broadcast %24 : vector<1x1x128xf32> to vector<2x64x128xf32>
    %26 = arith.addf %23, %25 : vector<2x64x128xf32>
    %27 = arith.truncf %26 : vector<2x64x128xf32> to vector<2x64x128xbf16>
    %c0_10 = arith.constant 0 : index
    %c0_11 = arith.constant 0 : index
    %28 = vector.load %arg5[%c0_10, %c0_11] : memref<64x1xf32, #tpu.memory_space<vmem>>, vector<64x1xf32>
    %c0_12 = arith.constant 0 : index
    %c0_13 = arith.constant 0 : index
    %29 = vector.load %arg7[%c0_12, %c0_13] : memref<64x1xf32, #tpu.memory_space<vmem>>, vector<64x1xf32>
    %c0_14 = arith.constant 0 : index
    %c0_15 = arith.constant 0 : index
    %30 = vector.load %arg4[%c0_14, %c0_15] : memref<64x64xbf16, #tpu.memory_space<vmem>>, vector<64x64xbf16>
    %31 = vector.extract_strided_slice %27 {offsets = [0, 0, 0], sizes = [1, 64, 128], strides = [1, 1, 1]} : vector<2x64x128xbf16> to vector<1x64x128xbf16>
    %32 = vector.shape_cast %31 : vector<1x64x128xbf16> to vector<64x128xbf16>
    %cst_16 = arith.constant dense<0.000000e+00> : vector<64x128xf32>
    %33 = tpu.matmul %30, %32, %cst_16 {dimension_numbers = #tpu.dot_dimension_numbers<[1], [0], [0], [1], [0, 0, 1, 1], [], []>} : vector<64x64xbf16>, vector<64x128xbf16>, vector<64x128xf32> -> vector<64x128xf32>
    %34 = vector.broadcast %28 : vector<64x1xf32> to vector<64x128xf32>
    %35 = arith.addf %33, %34 : vector<64x128xf32>
    %cst_17 = arith.constant 0.000000e+00 : f32
    %36 = vector.broadcast %cst_17 : f32 to vector<64x128xf32>
    %37 = arith.maximumf %35, %36 : vector<64x128xf32>
    %38 = arith.truncf %37 : vector<64x128xf32> to vector<64x128xbf16>
    %c0_18 = arith.constant 0 : index
    %c0_19 = arith.constant 0 : index
    %39 = vector.load %arg6[%c0_18, %c0_19] : memref<64x64xbf16, #tpu.memory_space<vmem>>, vector<64x64xbf16>
    %cst_20 = arith.constant dense<0.000000e+00> : vector<64x128xf32>
    %40 = tpu.matmul %39, %38, %cst_20 {dimension_numbers = #tpu.dot_dimension_numbers<[1], [0], [0], [1], [0, 0, 1, 1], [], []>} : vector<64x64xbf16>, vector<64x128xbf16>, vector<64x128xf32> -> vector<64x128xf32>
    %41 = vector.broadcast %29 : vector<64x1xf32> to vector<64x128xf32>
    %42 = arith.addf %40, %41 : vector<64x128xf32>
    %43 = vector.extract_strided_slice %0 {offsets = [0, 0, 0], sizes = [1, 64, 128], strides = [1, 1, 1]} : vector<2x64x128xf32> to vector<1x64x128xf32>
    %44 = vector.shape_cast %43 : vector<1x64x128xf32> to vector<64x128xf32>
    %45 = arith.addf %44, %42 : vector<64x128xf32>
    %c0_21 = arith.constant 0 : index
    %c0_22 = arith.constant 0 : index
    %c0_23 = arith.constant 0 : index
    %46 = vector.load %arg15[%c0_21, %c0_22, %c0_23] : memref<2x64x128xf32, #tpu.memory_space<vmem>>, vector<1x64x128xf32>
    %47 = vector.shape_cast %46 : vector<1x64x128xf32> to vector<64x128xf32>
    %48 = vector.shape_cast %45 : vector<64x128xf32> to vector<1x64x128xf32>
    tpu.vector_store %arg15[%c0_21, %c0_22, %c0_23], %48 {strides = array<i32>} : memref<2x64x128xf32, #tpu.memory_space<vmem>>, vector<1x64x128xf32>,
    %c0_24 = arith.constant 0 : index
    %c0_25 = arith.constant 0 : index
    %49 = vector.load %arg4[%c0_24, %c0_25] : memref<64x64xbf16, #tpu.memory_space<vmem>>, vector<64x64xbf16>
    %50 = vector.extract_strided_slice %27 {offsets = [1, 0, 0], sizes = [1, 64, 128], strides = [1, 1, 1]} : vector<2x64x128xbf16> to vector<1x64x128xbf16>
    %51 = vector.shape_cast %50 : vector<1x64x128xbf16> to vector<64x128xbf16>
    %cst_26 = arith.constant dense<0.000000e+00> : vector<64x128xf32>
    %52 = tpu.matmul %49, %51, %cst_26 {dimension_numbers = #tpu.dot_dimension_numbers<[1], [0], [0], [1], [0, 0, 1, 1], [], []>} : vector<64x64xbf16>, vector<64x128xbf16>, vector<64x128xf32> -> vector<64x128xf32>
    %53 = vector.broadcast %28 : vector<64x1xf32> to vector<64x128xf32>
    %54 = arith.addf %52, %53 : vector<64x128xf32>
    %cst_27 = arith.constant 0.000000e+00 : f32
    %55 = vector.broadcast %cst_27 : f32 to vector<64x128xf32>
    %56 = arith.maximumf %54, %55 : vector<64x128xf32>
    %57 = arith.truncf %56 : vector<64x128xf32> to vector<64x128xbf16>
    %c0_28 = arith.constant 0 : index
    %c0_29 = arith.constant 0 : index
    %58 = vector.load %arg6[%c0_28, %c0_29] : memref<64x64xbf16, #tpu.memory_space<vmem>>, vector<64x64xbf16>
    %cst_30 = arith.constant dense<0.000000e+00> : vector<64x128xf32>
    %59 = tpu.matmul %58, %57, %cst_30 {dimension_numbers = #tpu.dot_dimension_numbers<[1], [0], [0], [1], [0, 0, 1, 1], [], []>} : vector<64x64xbf16>, vector<64x128xbf16>, vector<64x128xf32> -> vector<64x128xf32>
    %60 = vector.broadcast %29 : vector<64x1xf32> to vector<64x128xf32>
    %61 = arith.addf %59, %60 : vector<64x128xf32>
    %62 = vector.extract_strided_slice %0 {offsets = [1, 0, 0], sizes = [1, 64, 128], strides = [1, 1, 1]} : vector<2x64x128xf32> to vector<1x64x128xf32>
    %63 = vector.shape_cast %62 : vector<1x64x128xf32> to vector<64x128xf32>
    %64 = arith.addf %63, %61 : vector<64x128xf32>
    %c1 = arith.constant 1 : index
    %c0_31 = arith.constant 0 : index
    %c0_32 = arith.constant 0 : index
    %65 = vector.load %arg15[%c1, %c0_31, %c0_32] : memref<2x64x128xf32, #tpu.memory_space<vmem>>, vector<1x64x128xf32>
    %66 = vector.shape_cast %65 : vector<1x64x128xf32> to vector<64x128xf32>
    %67 = vector.shape_cast %64 : vector<64x128xf32> to vector<1x64x128xf32>
    tpu.vector_store %arg15[%c1, %c0_31, %c0_32], %67 {strides = array<i32>} : memref<2x64x128xf32, #tpu.memory_space<vmem>>, vector<1x64x128xf32>,
    %c0_33 = arith.constant 0 : index
    %c0_34 = arith.constant 0 : index
    %c0_35 = arith.constant 0 : index
    %68 = vector.load %arg15[%c0_33, %c0_34, %c0_35] : memref<2x64x128xf32, #tpu.memory_space<vmem>>, vector<2x64x128xf32>
    %c0_36 = arith.constant 0 : index
    %c0_37 = arith.constant 0 : index
    %69 = vector.load %arg8[%c0_36, %c0_37] : memref<1x128xf32, #tpu.memory_space<vmem>>, vector<1x128xf32>
    %c0_38 = arith.constant 0 : index
    %c0_39 = arith.constant 0 : index
    %70 = vector.load %arg9[%c0_38, %c0_39] : memref<1x128xf32, #tpu.memory_space<vmem>>, vector<1x128xf32>
    %cst_40 = arith.constant dense<0.000000e+00> : vector<2x64xf32>
    %71 = vector.multi_reduction <add>, %68, %cst_40 [2] : vector<2x64x128xf32> to vector<2x64xf32>
    %72 = vector.shape_cast %71 : vector<2x64xf32> to vector<2x64x1xf32>
    %cst_41 = arith.constant 1.280000e+02 : f32
    %73 = vector.broadcast %cst_41 : f32 to vector<2x64x1xf32>
    %74 = arith.divf %72, %73 : vector<2x64x1xf32>
    %75 = vector.broadcast %74 : vector<2x64x1xf32> to vector<2x64x128xf32>
    %76 = arith.subf %68, %75 : vector<2x64x128xf32>
    %77 = arith.mulf %76, %76 : vector<2x64x128xf32>
    %cst_42 = arith.constant dense<0.000000e+00> : vector<2x64xf32>
    %78 = vector.multi_reduction <add>, %77, %cst_42 [2] : vector<2x64x128xf32> to vector<2x64xf32>
    %79 = vector.shape_cast %78 : vector<2x64xf32> to vector<2x64x1xf32>
    %cst_43 = arith.constant 1.280000e+02 : f32
    %80 = vector.broadcast %cst_43 : f32 to vector<2x64x1xf32>
    %81 = arith.divf %79, %80 : vector<2x64x1xf32>
    %82 = vector.broadcast %74 : vector<2x64x1xf32> to vector<2x64x128xf32>
    %83 = arith.subf %68, %82 : vector<2x64x128xf32>
    %cst_44 = arith.constant 9.99999974E-6 : f32
    %84 = vector.broadcast %cst_44 : f32 to vector<2x64x1xf32>
    %85 = arith.addf %81, %84 : vector<2x64x1xf32>
    %86 = math.rsqrt %85 : vector<2x64x1xf32>
    %87 = vector.broadcast %86 : vector<2x64x1xf32> to vector<2x64x128xf32>
    %88 = arith.mulf %83, %87 : vector<2x64x128xf32>
    %89 = vector.shape_cast %69 : vector<1x128xf32> to vector<1x1x128xf32>
    %90 = vector.broadcast %89 : vector<1x1x128xf32> to vector<2x64x128xf32>
    %91 = arith.mulf %88, %90 : vector<2x64x128xf32>
    %92 = vector.shape_cast %70 : vector<1x128xf32> to vector<1x1x128xf32>
    %93 = vector.broadcast %92 : vector<1x1x128xf32> to vector<2x64x128xf32>
    %94 = arith.addf %91, %93 : vector<2x64x128xf32>
    %95 = arith.truncf %94 : vector<2x64x128xf32> to vector<2x64x128xbf16>
    %96 = vector.shape_cast %95 : vector<2x64x128xbf16> to vector<128x128xbf16>
    %c0_45 = arith.constant 0 : index
    %c0_46 = arith.constant 0 : index
    %97 = vector.load %arg10[%c0_45, %c0_46] : memref<128x256xbf16, #tpu.memory_space<vmem>>, vector<128x256xbf16>
    %cst_47 = arith.constant dense<0.000000e+00> : vector<128x256xf32>
    %98 = tpu.matmul %96, %97, %cst_47 {dimension_numbers = #tpu.dot_dimension_numbers<[1], [0], [0], [1], [0, 0, 1, 1], [], []>} : vector<128x128xbf16>, vector<128x256xbf16>, vector<128x256xf32> -> vector<128x256xf32>
    %c0_48 = arith.constant 0 : index
    %c0_49 = arith.constant 0 : index
    %99 = vector.load %arg11[%c0_48, %c0_49] : memref<1x256xf32, #tpu.memory_space<vmem>>, vector<1x256xf32>
    %100 = vector.broadcast %99 : vector<1x256xf32> to vector<128x256xf32>
    %101 = arith.addf %98, %100 : vector<128x256xf32>
    %cst_50 = arith.constant 0.000000e+00 : f32
    %102 = vector.broadcast %cst_50 : f32 to vector<128x256xf32>
    %103 = arith.maximumf %101, %102 : vector<128x256xf32>
    %104 = arith.truncf %103 : vector<128x256xf32> to vector<128x256xbf16>
    %c0_51 = arith.constant 0 : index
    %c0_52 = arith.constant 0 : index
    %105 = vector.load %arg12[%c0_51, %c0_52] : memref<256x128xbf16, #tpu.memory_space<vmem>>, vector<256x128xbf16>
    %cst_53 = arith.constant dense<0.000000e+00> : vector<128x128xf32>
    %106 = tpu.matmul %104, %105, %cst_53 {dimension_numbers = #tpu.dot_dimension_numbers<[1], [0], [0], [1], [0, 0, 1, 1], [], []>} : vector<128x256xbf16>, vector<256x128xbf16>, vector<128x128xf32> -> vector<128x128xf32>
    %c0_54 = arith.constant 0 : index
    %c0_55 = arith.constant 0 : index
    %107 = vector.load %arg13[%c0_54, %c0_55] : memref<1x128xf32, #tpu.memory_space<vmem>>, vector<1x128xf32>
    %108 = vector.broadcast %107 : vector<1x128xf32> to vector<128x128xf32>
    %109 = arith.addf %106, %108 : vector<128x128xf32>
    %110 = vector.shape_cast %109 : vector<128x128xf32> to vector<2x64x128xf32>
    %111 = arith.addf %68, %110 : vector<2x64x128xf32>
    %c0_56 = arith.constant 0 : index
    %c0_57 = arith.constant 0 : index
    %c0_58 = arith.constant 0 : index
    %112 = vector.load %arg14[%c0_56, %c0_57, %c0_58] : memref<2x64x128xf32, #tpu.memory_space<vmem>>, vector<2x64x128xf32>
    tpu.vector_store %arg14[%c0_56, %c0_57, %c0_58], %111 {strides = array<i32>} : memref<2x64x128xf32, #tpu.memory_space<vmem>>, vector<2x64x128xf32>,
    return
  }
  func.func @transform_0(%arg0: i32) -> (i32, i32, i32) {
    %c0_i32 = arith.constant 0 : i32
    %c0_i32_0 = arith.constant 0 : i32
    %c0_i32_1 = arith.constant 0 : i32
    return %arg0, %c0_i32, %c0_i32_0 : i32, i32, i32
  }
  func.func @transform_1(%arg0: i32) -> (i32, i32) {
    %c0_i32 = arith.constant 0 : i32
    %c0_i32_0 = arith.constant 0 : i32
    %c0_i32_1 = arith.constant 0 : i32
    return %c0_i32, %c0_i32_0 : i32, i32
  }
  func.func @transform_2(%arg0: i32) -> (i32, i32) {
    %c0_i32 = arith.constant 0 : i32
    %c0_i32_0 = arith.constant 0 : i32
    %c0_i32_1 = arith.constant 0 : i32
    return %c0_i32, %c0_i32_0 : i32, i32
  }
  func.func @transform_3(%arg0: i32) -> (i32, i32) {
    %c0_i32 = arith.constant 0 : i32
    %c0_i32_0 = arith.constant 0 : i32
    %c0_i32_1 = arith.constant 0 : i32
    return %c0_i32, %c0_i32_0 : i32, i32
  }
  func.func @transform_4(%arg0: i32) -> (i32, i32) {
    %c0_i32 = arith.constant 0 : i32
    %c0_i32_0 = arith.constant 0 : i32
    %c0_i32_1 = arith.constant 0 : i32
    return %c0_i32, %c0_i32_0 : i32, i32
  }
  func.func @transform_5(%arg0: i32) -> (i32, i32) {
    %c0_i32 = arith.constant 0 : i32
    %c0_i32_0 = arith.constant 0 : i32
    %c0_i32_1 = arith.constant 0 : i32
    return %c0_i32, %c0_i32_0 : i32, i32
  }
  func.func @transform_6(%arg0: i32) -> (i32, i32) {
    %c0_i32 = arith.constant 0 : i32
    %c0_i32_0 = arith.constant 0 : i32
    %c0_i32_1 = arith.constant 0 : i32
    return %c0_i32, %c0_i32_0 : i32, i32
  }
  func.func @transform_7(%arg0: i32) -> (i32, i32) {
    %c0_i32 = arith.constant 0 : i32
    %c0_i32_0 = arith.constant 0 : i32
    %c0_i32_1 = arith.constant 0 : i32
    return %c0_i32, %c0_i32_0 : i32, i32
  }
  func.func @transform_8(%arg0: i32) -> (i32, i32) {
    %c0_i32 = arith.constant 0 : i32
    %c0_i32_0 = arith.constant 0 : i32
    %c0_i32_1 = arith.constant 0 : i32
    return %c0_i32, %c0_i32_0 : i32, i32
  }
  func.func @transform_9(%arg0: i32) -> (i32, i32) {
    %c0_i32 = arith.constant 0 : i32
    %c0_i32_0 = arith.constant 0 : i32
    %c0_i32_1 = arith.constant 0 : i32
    return %c0_i32, %c0_i32_0 : i32, i32
  }
  func.func @transform_10(%arg0: i32) -> (i32, i32) {
    %c0_i32 = arith.constant 0 : i32
    %c0_i32_0 = arith.constant 0 : i32
    %c0_i32_1 = arith.constant 0 : i32
    return %c0_i32, %c0_i32_0 : i32, i32
  }
  func.func @transform_11(%arg0: i32) -> (i32, i32) {
    %c0_i32 = arith.constant 0 : i32
    %c0_i32_0 = arith.constant 0 : i32
    %c0_i32_1 = arith.constant 0 : i32
    return %c0_i32, %c0_i32_0 : i32, i32
  }
  func.func @transform_12(%arg0: i32) -> (i32, i32) {
    %c0_i32 = arith.constant 0 : i32
    %c0_i32_0 = arith.constant 0 : i32
    %c0_i32_1 = arith.constant 0 : i32
    return %c0_i32, %c0_i32_0 : i32, i32
  }
  func.func @transform_13(%arg0: i32) -> (i32, i32, i32) {
    %c0_i32 = arith.constant 0 : i32
    %c0_i32_0 = arith.constant 0 : i32
    %c0_i32_1 = arith.constant 0 : i32
    return %arg0, %c0_i32, %c0_i32_0 : i32, i32, i32
  }
}

</mosaic_0001>

<llo_original>
// kernel: tpu_custom_call.1
$region0: #{tpu_custom_call.1}
  #allocation0 [shape = 'u32[]', space=smem, size = 0x4, offset = 0x4, fixed_abs, tag = 'smem constant byte address 0x4 - core index']
  #allocation1 [shape = 'u32[144,128]{1,0:T(1,128)}', space=vmem, size = 0x12000, scoped, tag = 'internal scratch']
  #allocation2 [shape = 'f32[2,64,128]{2,1,0:T(8,128)}', space=vmem, size = 0x10000, scoped, tag = 'scratch operand']
  %s0 = inlined_call_operand.hbm [shape: f32[4,64,128], index: 0, kind: input, shape index: {}]
  %s1 = inlined_call_operand.vmem [shape: f32[1,128], index: 1, kind: input, shape index: {}]
  %s2 = inlined_call_operand.vmem [shape: f32[1,128], index: 2, kind: input, shape index: {}]
  %s3 = inlined_call_operand.vmem [shape: bf16[64,64], index: 3, kind: input, shape index: {}]
  %s4 = inlined_call_operand.vmem [shape: f32[64,1], index: 4, kind: input, shape index: {}]
  %s5 = inlined_call_operand.hbm [shape: bf16[64,64], index: 5, kind: input, shape index: {}]
  %s6 = inlined_call_operand.vmem [shape: f32[64,1], index: 6, kind: input, shape index: {}]
  %s7 = inlined_call_operand.hbm [shape: f32[1,128], index: 7, kind: input, shape index: {}]
  %s8 = inlined_call_operand.hbm [shape: f32[1,128], index: 8, kind: input, shape index: {}]
  %s9 = inlined_call_operand.vmem [shape: bf16[128,256], index: 9, kind: input, shape index: {}]
  %s10 = inlined_call_operand.vmem [shape: f32[1,256], index: 10, kind: input, shape index: {}]
  %s11 = inlined_call_operand.hbm [shape: bf16[256,128], index: 11, kind: input, shape index: {}]
  %s12 = inlined_call_operand.vmem [shape: f32[1,128], index: 12, kind: input, shape index: {}]
  %s13 = inlined_call_operand.hbm [shape: f32[4,64,128], index: 13, kind: output, shape index: {}]
  %s14 = sld [smem:[#allocation0]]
  $region105: #{tpu_custom_call.1} parent=0
    _
  %s16 = ssub.s32 1, %s14
  %s17 = scalar_select 0, %s16, %s14
  $region1: #{tpu_custom_call.1} parent=0
    #allocation3 [shape = 'u8[131072]{0}', space=vmem, size = 0x20000, scoped, tag = 'input window, operand 0']
    #allocation4 [shape = 's32[2]{0}', space=sflag, size = 0x8, scoped, tag = 'scoped memory for tpu_custom_call.1']
    #allocation5 [shape = 's32[2]{0}', space=sflag, size = 0x8, scoped, tag = 'scoped memory for tpu_custom_call.1']
    #allocation6 [shape = 'u8[16384]{0}', space=vmem, size = 0x4000, scoped, tag = 'input window, operand 5, single buffered']
    #allocation7 [shape = 's32[1]{0}', space=sflag, size = 0x4, scoped, tag = 'scoped memory for tpu_custom_call.1']
    #allocation8 [shape = 'u8[512]{0}', space=vmem, size = 0x400, scoped, tag = 'input window, operand 7, single buffered']
    #allocation9 [shape = 'u8[512]{0}', space=vmem, size = 0x400, scoped, tag = 'input window, operand 8, single buffered']
    #allocation10 [shape = 's32[1]{0}', space=sflag, size = 0x4, scoped, tag = 'scoped memory for tpu_custom_call.1']
    #allocation11 [shape = 'u8[65536]{0}', space=vmem, size = 0x10000, scoped, tag = 'input window, operand 11, single buffered']
    #allocation12 [shape = 'u8[131072]{0}', space=vmem, size = 0x20000, scoped, tag = 'output window, operand 0']
    %18 = vsyncpa [#allocation4], 0
    %s19 = scalar_lea.sflag [#allocation4], 1
    %20 = vsyncpa %s19, 0
    %21 = vsyncpa [#allocation7], 0
    %22 = vsyncpa [#allocation10], 0
    %23 = vsyncpa [#allocation5], 0
    %s24 = scalar_lea.sflag [#allocation5], 1
    %25 = vsyncpa %s24, 0
    loop: start=0, step=1, limit=4
    $region2: #{tpu_custom_call.1} parent=1 // loop_pre_header
      _
    $region3: #{tpu_custom_call.1} parent=1 // loop_header
      %s27 = sphi 0, %s31
      %p28 = scmp.ge.s32.totalorder %s27, 4
      %s37 = sphi 0, %s39
      %s40 = sphi 0, %s37
      %s41 = sphi 0, %s40
      %s57 = sphi 0, %s41
      %s61 = sphi 0, %s61
      %s63 = sphi 0, %s61
      %s64 = sphi 0, %s63
      %s78 = sphi 0, %s64
      %s82 = sphi 0, %s82
      %s84 = sphi 0, %s82
      %s85 = sphi 0, %s84
      %s99 = sphi 0, %s85
      %s103 = sphi 0, %s103
      %s105 = sphi 0, %s103
      %s106 = sphi 0, %s105
      %s120 = sphi 0, %s106
      %s124 = sphi 0, %s124
      %s126 = sphi 0, %s124
      %s127 = sphi 0, %s126
      %s141 = sphi 0, %s127
      %s145 = sphi 0, %s145
      %s147 = sphi 0, %s145
      %s148 = sphi 0, %s147
      %s162 = sphi 0, %s148
      %s166 = sphi 0, %s166
      %s168 = sphi 0, %s166
      %s169 = sphi 0, %s168
      %s183 = sphi 0, %s169
      %s187 = sphi 0, %s187
      %s189 = sphi 0, %s187
      %s190 = sphi 0, %s189
      %s204 = sphi 0, %s190
      %s208 = sphi 0, %s208
      %s210 = sphi 0, %s208
      %s211 = sphi 0, %s210
      %s225 = sphi 0, %s211
      %s229 = sphi 0, %s229
      %s231 = sphi 0, %s229
      %s232 = sphi 0, %s231
      %s246 = sphi 0, %s232
      %s250 = sphi 0, %s250
      %s252 = sphi 0, %s250
      %s253 = sphi 0, %s252
      %s267 = sphi 0, %s253
      %s271 = sphi 0, %s271
      %s273 = sphi 0, %s271
      %s274 = sphi 0, %s273
      %s288 = sphi 0, %s274
      %s292 = sphi 0, %s292
      %s294 = sphi 0, %s292
      %s295 = sphi 0, %s294
      %s309 = sphi 0, %s295
      %s315 = sphi 0, %s317
      %s318 = sphi 0, %s315
      %s319 = sphi 0, %s318
      %s335 = sphi 0, %s319
    $region4: #{tpu_custom_call.1} parent=1 // loop_header_branch
      %30 = sbr.rel (%p28) target = $region8
    $region5: #{tpu_custom_call.1} parent=1 // loop_body
      %s32 = ssub.s32 %s27, 1
      %s33 = ssub.s32 %s27, 2
      %s34 = sadd.s32 %s27, 1
      %s35 = ssub.s32 %s27, %s34
      %p36 = scmp.eq.s32.totalorder %s35, 0
      %s38 = sadd.s32 %s37, 1
      %s39 = scalar_select %p36, %s37, %s38
      %p42 = pneg %p36
      %p43 = scmp.eq.s32.totalorder %s27, 1
      %p44 = por %p42, %p43
      %p45 = scmp.ne.s32.totalorder %s37, %s40
      %p46 = scmp.eq.s32.totalorder %s27, 0
      %p47 = por %p45, %p46
      %p48 = scmp.ne.s32.totalorder %s37, %s40
      %p49 = scmp.eq.s32.totalorder %s32, 1
      %p50 = por %p48, %p49
      %p51 = scmp.ne.s32.totalorder %s40, %s41
      %p52 = scmp.eq.s32.totalorder %s32, 0
      %p53 = por %p51, %p52
      %p54 = scmp.ne.s32.totalorder %s40, %s41
      %p55 = scmp.eq.s32.totalorder %s33, 1
      %p56 = por %p54, %p55
      %p58 = scmp.ne.s32.totalorder %s41, %s57
      %p59 = scmp.eq.s32.totalorder %s33, 0
      %p60 = por %p58, %p59
      %s62 = sadd.s32 %s61, 1
      %p65 = scmp.eq.s32.totalorder %s27, 1
      %p66 = scmp.ne.s32.totalorder %s61, %s63
      %p67 = scmp.eq.s32.totalorder %s27, 0
      %p68 = por %p66, %p67
      %p69 = scmp.ne.s32.totalorder %s61, %s63
      %p70 = scmp.eq.s32.totalorder %s32, 1
      %p71 = por %p69, %p70
      %p72 = scmp.ne.s32.totalorder %s63, %s64
      %p73 = scmp.eq.s32.totalorder %s32, 0
      %p74 = por %p72, %p73
      %p75 = scmp.ne.s32.totalorder %s63, %s64
      %p76 = scmp.eq.s32.totalorder %s33, 1
      %p77 = por %p75, %p76
      %p79 = scmp.ne.s32.totalorder %s64, %s78
      %p80 = scmp.eq.s32.totalorder %s33, 0
      %p81 = por %p79, %p80
      %s83 = sadd.s32 %s82, 1
      %p86 = scmp.eq.s32.totalorder %s27, 1
      %p87 = scmp.ne.s32.totalorder %s82, %s84
      %p88 = scmp.eq.s32.totalorder %s27, 0
      %p89 = por %p87, %p88
      %p90 = scmp.ne.s32.totalorder %s82, %s84
      %p91 = scmp.eq.s32.totalorder %s32, 1
      %p92 = por %p90, %p91
      %p93 = scmp.ne.s32.totalorder %s84, %s85
      %p94 = scmp.eq.s32.totalorder %s32, 0
      %p95 = por %p93, %p94
      %p96 = scmp.ne.s32.totalorder %s84, %s85
      %p97 = scmp.eq.s32.totalorder %s33, 1
      %p98 = por %p96, %p97
      %p100 = scmp.ne.s32.totalorder %s85, %s99
      %p101 = scmp.eq.s32.totalorder %s33, 0
      %p102 = por %p100, %p101
      %s104 = sadd.s32 %s103, 1
      %p107 = scmp.eq.s32.totalorder %s27, 1
      %p108 = scmp.ne.s32.totalorder %s103, %s105
      %p109 = scmp.eq.s32.totalorder %s27, 0
      %p110 = por %p108, %p109
      %p111 = scmp.ne.s32.totalorder %s103, %s105
      %p112 = scmp.eq.s32.totalorder %s32, 1
      %p113 = por %p111, %p112
      %p114 = scmp.ne.s32.totalorder %s105, %s106
      %p115 = scmp.eq.s32.totalorder %s32, 0
      %p116 = por %p114, %p115
      %p117 = scmp.ne.s32.totalorder %s105, %s106
      %p118 = scmp.eq.s32.totalorder %s33, 1
      %p119 = por %p117, %p118
      %p121 = scmp.ne.s32.totalorder %s106, %s120
      %p122 = scmp.eq.s32.totalorder %s33, 0
      %p123 = por %p121, %p122
      %s125 = sadd.s32 %s124, 1
      %p128 = scmp.eq.s32.totalorder %s27, 1
      %p129 = scmp.ne.s32.totalorder %s124, %s126
      %p130 = scmp.eq.s32.totalorder %s27, 0
      %p131 = por %p129, %p130
      %p132 = scmp.ne.s32.totalorder %s124, %s126
      %p133 = scmp.eq.s32.totalorder %s32, 1
      %p134 = por %p132, %p133
      %p135 = scmp.ne.s32.totalorder %s126, %s127
      %p136 = scmp.eq.s32.totalorder %s32, 0
      %p137 = por %p135, %p136
      %p138 = scmp.ne.s32.totalorder %s126, %s127
      %p139 = scmp.eq.s32.totalorder %s33, 1
      %p140 = por %p138, %p139
      %p142 = scmp.ne.s32.totalorder %s127, %s141
      %p143 = scmp.eq.s32.totalorder %s33, 0
      %p144 = por %p142, %p143
      %s146 = sadd.s32 %s145, 1
      %p149 = scmp.eq.s32.totalorder %s27, 1
      %p150 = scmp.ne.s32.totalorder %s145, %s147
      %p151 = scmp.eq.s32.totalorder %s27, 0
      %p152 = por %p150, %p151
      %p153 = scmp.ne.s32.totalorder %s145, %s147
      %p154 = scmp.eq.s32.totalorder %s32, 1
      %p155 = por %p153, %p154
      %p156 = scmp.ne.s32.totalorder %s147, %s148
      %p157 = scmp.eq.s32.totalorder %s32, 0
      %p158 = por %p156, %p157
      %p159 = scmp.ne.s32.totalorder %s147, %s148
      %p160 = scmp.eq.s32.totalorder %s33, 1
      %p161 = por %p159, %p160
      %p163 = scmp.ne.s32.totalorder %s148, %s162
      %p164 = scmp.eq.s32.totalorder %s33, 0
      %p165 = por %p163, %p164
      %s167 = sadd.s32 %s166, 1
      %p170 = scmp.eq.s32.totalorder %s27, 1
      %p171 = scmp.ne.s32.totalorder %s166, %s168
      %p172 = scmp.eq.s32.totalorder %s27, 0
      %p173 = por %p171, %p172
      %p174 = scmp.ne.s32.totalorder %s166, %s168
      %p175 = scmp.eq.s32.totalorder %s32, 1
      %p176 = por %p174, %p175
      %p177 = scmp.ne.s32.totalorder %s168, %s169
      %p178 = scmp.eq.s32.totalorder %s32, 0
      %p179 = por %p177, %p178
      %p180 = scmp.ne.s32.totalorder %s168, %s169
      %p181 = scmp.eq.s32.totalorder %s33, 1
      %p182 = por %p180, %p181
      %p184 = scmp.ne.s32.totalorder %s169, %s183
      %p185 = scmp.eq.s32.totalorder %s33, 0
      %p186 = por %p184, %p185
      %s188 = sadd.s32 %s187, 1
      %p191 = scmp.eq.s32.totalorder %s27, 1
      %p192 = scmp.ne.s32.totalorder %s187, %s189
      %p193 = scmp.eq.s32.totalorder %s27, 0
      %p194 = por %p192, %p193
      %p195 = scmp.ne.s32.totalorder %s187, %s189
      %p196 = scmp.eq.s32.totalorder %s32, 1
      %p197 = por %p195, %p196
      %p198 = scmp.ne.s32.totalorder %s189, %s190
      %p199 = scmp.eq.s32.totalorder %s32, 0
      %p200 = por %p198, %p199
      %p201 = scmp.ne.s32.totalorder %s189, %s190
      %p202 = scmp.eq.s32.totalorder %s33, 1
      %p203 = por %p201, %p202
      %p205 = scmp.ne.s32.totalorder %s190, %s204
      %p206 = scmp.eq.s32.totalorder %s33, 0
      %p207 = por %p205, %p206
      %s209 = sadd.s32 %s208, 1
      %p212 = scmp.eq.s32.totalorder %s27, 1
      %p213 = scmp.ne.s32.totalorder %s208, %s210
      %p214 = scmp.eq.s32.totalorder %s27, 0
      %p215 = por %p213, %p214
      %p216 = scmp.ne.s32.totalorder %s208, %s210
      %p217 = scmp.eq.s32.totalorder %s32, 1
      %p218 = por %p216, %p217
      %p219 = scmp.ne.s32.totalorder %s210, %s211
      %p220 = scmp.eq.s32.totalorder %s32, 0
      %p221 = por %p219, %p220
      %p222 = scmp.ne.s32.totalorder %s210, %s211
      %p223 = scmp.eq.s32.totalorder %s33, 1
      %p224 = por %p222, %p223
      %p226 = scmp.ne.s32.totalorder %s211, %s225
      %p227 = scmp.eq.s32.totalorder %s33, 0
      %p228 = por %p226, %p227
      %s230 = sadd.s32 %s229, 1
      %p233 = scmp.eq.s32.totalorder %s27, 1
      %p234 = scmp.ne.s32.totalorder %s229, %s231
      %p235 = scmp.eq.s32.totalorder %s27, 0
      %p236 = por %p234, %p235
      %p237 = scmp.ne.s32.totalorder %s229, %s231
      %p238 = scmp.eq.s32.totalorder %s32, 1
      %p239 = por %p237, %p238
      %p240 = scmp.ne.s32.totalorder %s231, %s232
      %p241 = scmp.eq.s32.totalorder %s32, 0
      %p242 = por %p240, %p241
      %p243 = scmp.ne.s32.totalorder %s231, %s232
      %p244 = scmp.eq.s32.totalorder %s33, 1
      %p245 = por %p243, %p244
      %p247 = scmp.ne.s32.totalorder %s232, %s246
      %p248 = scmp.eq.s32.totalorder %s33, 0
      %p249 = por %p247, %p248
      %s251 = sadd.s32 %s250, 1
      %p254 = scmp.eq.s32.totalorder %s27, 1
      %p255 = scmp.ne.s32.totalorder %s250, %s252
      %p256 = scmp.eq.s32.totalorder %s27, 0
      %p257 = por %p255, %p256
      %p258 = scmp.ne.s32.totalorder %s250, %s252
      %p259 = scmp.eq.s32.totalorder %s32, 1
      %p260 = por %p258, %p259
      %p261 = scmp.ne.s32.totalorder %s252, %s253
      %p262 = scmp.eq.s32.totalorder %s32, 0
      %p263 = por %p261, %p262
      %p264 = scmp.ne.s32.totalorder %s252, %s253
      %p265 = scmp.eq.s32.totalorder %s33, 1
      %p266 = por %p264, %p265
      %p268 = scmp.ne.s32.totalorder %s253, %s267
      %p269 = scmp.eq.s32.totalorder %s33, 0
      %p270 = por %p268, %p269
      %s272 = sadd.s32 %s271, 1
      %p275 = scmp.eq.s32.totalorder %s27, 1
      %p276 = scmp.ne.s32.totalorder %s271, %s273
      %p277 = scmp.eq.s32.totalorder %s27, 0
      %p278 = por %p276, %p277
      %p279 = scmp.ne.s32.totalorder %s271, %s273
      %p280 = scmp.eq.s32.totalorder %s32, 1
      %p281 = por %p279, %p280
      %p282 = scmp.ne.s32.totalorder %s273, %s274
      %p283 = scmp.eq.s32.totalorder %s32, 0
      %p284 = por %p282, %p283
      %p285 = scmp.ne.s32.totalorder %s273, %s274
      %p286 = scmp.eq.s32.totalorder %s33, 1
      %p287 = por %p285, %p286
      %p289 = scmp.ne.s32.totalorder %s274, %s288
      %p290 = scmp.eq.s32.totalorder %s33, 0
      %p291 = por %p289, %p290
      %s293 = sadd.s32 %s292, 1
      %p296 = scmp.eq.s32.totalorder %s27, 1
      %p297 = scmp.ne.s32.totalorder %s292, %s294
      %p298 = scmp.eq.s32.totalorder %s27, 0
      %p299 = por %p297, %p298
      %p300 = scmp.ne.s32.totalorder %s292, %s294
      %p301 = scmp.eq.s32.totalorder %s32, 1
      %p302 = por %p300, %p301
      %p303 = scmp.ne.s32.totalorder %s294, %s295
      %p304 = scmp.eq.s32.totalorder %s32, 0
      %p305 = por %p303, %p304
      %p306 = scmp.ne.s32.totalorder %s294, %s295
      %p307 = scmp.eq.s32.totalorder %s33, 1
      %p308 = por %p306, %p307
      %p310 = scmp.ne.s32.totalorder %s295, %s309
      %p311 = scmp.eq.s32.totalorder %s33, 0
      %p312 = por %p310, %p311
      %s313 = ssub.s32 %s27, %s34
      %p314 = scmp.eq.s32.totalorder %s313, 0
      %s316 = sadd.s32 %s315, 1
      %s317 = scalar_select %p314, %s315, %s316
      %p320 = pneg %p314
      %p321 = scmp.eq.s32.totalorder %s27, 1
      %p322 = por %p320, %p321
      %p323 = scmp.ne.s32.totalorder %s315, %s318
      %p324 = scmp.eq.s32.totalorder %s27, 0
      %p325 = por %p323, %p324
      %p326 = scmp.ne.s32.totalorder %s315, %s318
      %p327 = scmp.eq.s32.totalorder %s32, 1
      %p328 = por %p326, %p327
      %p329 = scmp.ne.s32.totalorder %s318, %s319
      %p330 = scmp.eq.s32.totalorder %s32, 0
      %p331 = por %p329, %p330
      %p332 = scmp.ne.s32.totalorder %s318, %s319
      %p333 = scmp.eq.s32.totalorder %s33, 1
      %p334 = por %p332, %p333
      %p336 = scmp.ne.s32.totalorder %s319, %s335
      %p337 = scmp.eq.s32.totalorder %s33, 0
      %p338 = por %p336, %p337
      %p339 = scmp.le.s32.totalorder 1, %s27
      %p340 = scmp.lt.s32.totalorder %s27, 3
      %p341 = pnand %p339, %p340
      %p342 = pneg %p341
      // Predicated region
      $region9: #{tpu_custom_call.1} parent=5 // pred_check
        _
      $region10: #{tpu_custom_call.1} parent=5 // pred_check_branch
        %344 = sbr.rel (%p341) target = $region12
      $region11: #{tpu_custom_call.1} parent=5 // pred_region
        %s345 = ssub.s32 %s27, 1
        // Predicated region
        $region13: #{tpu_custom_call.1} parent=11 // pred_check
          %p346 = pneg %p74
        $region14: #{tpu_custom_call.1} parent=11 // pred_check_branch
          %348 = sbr.rel (%p346) target = $region16
        $region15: #{tpu_custom_call.1} parent=11 // pred_region
          _
        $region16: #{tpu_custom_call.1} parent=11 // pred_fallthru
          _
        // Predicated region
        $region17: #{tpu_custom_call.1} parent=11 // pred_check
          %p349 = pneg %p95
        $region18: #{tpu_custom_call.1} parent=11 // pred_check_branch
          %351 = sbr.rel (%p349) target = $region20
        $region19: #{tpu_custom_call.1} parent=11 // pred_region
          _
        $region20: #{tpu_custom_call.1} parent=11 // pred_fallthru
          _
        // Predicated region
        $region21: #{tpu_custom_call.1} parent=11 // pred_check
          %p352 = pneg %p116
        $region22: #{tpu_custom_call.1} parent=11 // pred_check_branch
          %354 = sbr.rel (%p352) target = $region24
        $region23: #{tpu_custom_call.1} parent=11 // pred_region
          _
        $region24: #{tpu_custom_call.1} parent=11 // pred_fallthru
          _
        // Predicated region
        $region25: #{tpu_custom_call.1} parent=11 // pred_check
          %p355 = pneg %p137
        $region26: #{tpu_custom_call.1} parent=11 // pred_check_branch
          %357 = sbr.rel (%p355) target = $region28
        $region27: #{tpu_custom_call.1} parent=11 // pred_region
          _
        $region28: #{tpu_custom_call.1} parent=11 // pred_fallthru
          _
        // Predicated region
        $region29: #{tpu_custom_call.1} parent=11 // pred_check
          %p358 = pneg %p158
        $region30: #{tpu_custom_call.1} parent=11 // pred_check_branch
          %360 = sbr.rel (%p358) target = $region32
        $region31: #{tpu_custom_call.1} parent=11 // pred_region
          %s362 = ssub.s32 512, 512
          %363 = vsyncadd [#allocation7], %s362
          %s364 = sshll.u32 [#allocation6], 4
          %s365 = int_to_ptr.vmem [resolvable:$true] %s364
          %370 = dma.hbm_to_vmem [thread:$0]  %s5, 512, %s365, [#allocation7], 64, 64, 4
        $region32: #{tpu_custom_call.1} parent=11 // pred_fallthru
          _
        // Predicated region
        $region33: #{tpu_custom_call.1} parent=11 // pred_check
          %p371 = pneg %p179
        $region34: #{tpu_custom_call.1} parent=11 // pred_check_branch
          %373 = sbr.rel (%p371) target = $region36
        $region35: #{tpu_custom_call.1} parent=11 // pred_region
          _
        $region36: #{tpu_custom_call.1} parent=11 // pred_fallthru
          _
        // Predicated region
        $region37: #{tpu_custom_call.1} parent=11 // pred_check
          %p374 = pneg %p200
        $region38: #{tpu_custom_call.1} parent=11 // pred_check_branch
          %376 = sbr.rel (%p374) target = $region40
        $region39: #{tpu_custom_call.1} parent=11 // pred_region
          %s378 = ssub.s32 16, 16
          %379 = vsyncadd [#allocation7], %s378
          %s381 = sshll.u32 [#allocation8], 4
          %s382 = int_to_ptr.vmem [resolvable:$true] %s381
          %384 = dma.hbm_to_vmem [thread:$0]  %s7, 16, %s382, [#allocation7]
        $region40: #{tpu_custom_call.1} parent=11 // pred_fallthru
          _
        // Predicated region
        $region41: #{tpu_custom_call.1} parent=11 // pred_check
          %p385 = pneg %p221
        $region42: #{tpu_custom_call.1} parent=11 // pred_check_branch
          %387 = sbr.rel (%p385) target = $region44
        $region43: #{tpu_custom_call.1} parent=11 // pred_region
          %s389 = ssub.s32 16, 16
          %390 = vsyncadd [#allocation10], %s389
          %s392 = sshll.u32 [#allocation9], 4
          %s393 = int_to_ptr.vmem [resolvable:$true] %s392
          %395 = dma.hbm_to_vmem [thread:$0]  %s8, 16, %s393, [#allocation10]
        $region44: #{tpu_custom_call.1} parent=11 // pred_fallthru
          _
        // Predicated region
        $region45: #{tpu_custom_call.1} parent=11 // pred_check
          %p396 = pneg %p242
        $region46: #{tpu_custom_call.1} parent=11 // pred_check_branch
          %398 = sbr.rel (%p396) target = $region48
        $region47: #{tpu_custom_call.1} parent=11 // pred_region
          _
        $region48: #{tpu_custom_call.1} parent=11 // pred_fallthru
          _
        // Predicated region
        $region49: #{tpu_custom_call.1} parent=11 // pred_check
          %p399 = pneg %p263
        $region50: #{tpu_custom_call.1} parent=11 // pred_check_branch
          %401 = sbr.rel (%p399) target = $region52
        $region51: #{tpu_custom_call.1} parent=11 // pred_region
          _
        $region52: #{tpu_custom_call.1} parent=11 // pred_fallthru
          _
        // Predicated region
        $region53: #{tpu_custom_call.1} parent=11 // pred_check
          %p402 = pneg %p284
        $region54: #{tpu_custom_call.1} parent=11 // pred_check_branch
          %404 = sbr.rel (%p402) target = $region56
        $region55: #{tpu_custom_call.1} parent=11 // pred_region
          %s406 = ssub.s32 2048, 2048
          %407 = vsyncadd [#allocation10], %s406
          %s408 = sshll.u32 [#allocation11], 4
          %s409 = int_to_ptr.vmem [resolvable:$true] %s408
          %414 = dma.hbm_to_vmem [thread:$0]  %s11, 2048, %s409, [#allocation10], 64, 64, 4
        $region56: #{tpu_custom_call.1} parent=11 // pred_fallthru
          _
        // Predicated region
        $region57: #{tpu_custom_call.1} parent=11 // pred_check
          %p415 = pneg %p305
        $region58: #{tpu_custom_call.1} parent=11 // pred_check_branch
          %417 = sbr.rel (%p415) target = $region60
        $region59: #{tpu_custom_call.1} parent=11 // pred_region
          _
        $region60: #{tpu_custom_call.1} parent=11 // pred_fallthru
          _
      $region12: #{tpu_custom_call.1} parent=5 // pred_fallthru
        _
      %p418 = scmp.lt.s32.totalorder %s27, 2
      // Predicated region
      $region61: #{tpu_custom_call.1} parent=5 // pred_check
        %p419 = pneg %p418
      $region62: #{tpu_custom_call.1} parent=5 // pred_check_branch
        %421 = sbr.rel (%p419) target = $region64
      $region63: #{tpu_custom_call.1} parent=5 // pred_region
        // Predicated region
        $region65: #{tpu_custom_call.1} parent=63 // pred_check
          %p422 = pneg %p47
        $region66: #{tpu_custom_call.1} parent=63 // pred_check_branch
          %424 = sbr.rel (%p422) target = $region68
        $region67: #{tpu_custom_call.1} parent=63 // pred_region
          %s425 = sand.u32 %s37, 1
          %s426 = scalar_lea.sflag [#allocation4], %s425
          %s427 = sand.u32 %s37, 1
          %s428 = smul.addr %s427, 128
          %s429 = scalar_lea.vmem [#allocation3], %s428
          %s430 = smul.u32 2, %s27
          %s432 = ssub.s32 2048, 2048
          %433 = vsyncadd %s426, %s432
          %s434 = smul.addr %s430, 8
          %s435 = smul.addr %s434, 128
          %s436 = scalar_lea.hbm %s0, %s435
          %s437 = sshll.u32 %s429, 4
          %s438 = int_to_ptr.vmem [resolvable:$true] %s437
          %443 = dma.hbm_to_vmem [thread:$0]  %s436, 2048, %s438, %s426, 128, 128, 8
        $region68: #{tpu_custom_call.1} parent=63 // pred_fallthru
          _
      $region64: #{tpu_custom_call.1} parent=5 // pred_fallthru
        _
      %p444 = scmp.le.s32.totalorder 1, %s27
      %p445 = scmp.lt.s32.totalorder %s27, 3
      %p446 = pnand %p444, %p445
      %p447 = pneg %p446
      // Predicated region
      $region69: #{tpu_custom_call.1} parent=5 // pred_check
        _
      $region70: #{tpu_custom_call.1} parent=5 // pred_check_branch
        %449 = sbr.rel (%p446) target = $region72
      $region71: #{tpu_custom_call.1} parent=5 // pred_region
        %s450 = ssub.s32 %s27, 1
        %s451 = sand.u32 %s40, 1
        %s452 = scalar_lea.sflag [#allocation4], %s451
        %s453 = sand.u32 %s40, 1
        %s454 = smul.addr %s453, 128
        %s455 = scalar_lea.vmem [#allocation3], %s454
        // Predicated region
        $region73: #{tpu_custom_call.1} parent=71 // pred_check
          %p456 = pneg %p53
        $region74: #{tpu_custom_call.1} parent=71 // pred_check_branch
          %458 = sbr.rel (%p456) target = $region76
        $region75: #{tpu_custom_call.1} parent=71 // pred_region
          %459 = dma.done %s452, 2048
        $region76: #{tpu_custom_call.1} parent=71 // pred_fallthru
          _
        // Predicated region
        $region77: #{tpu_custom_call.1} parent=71 // pred_check
          %p460 = pneg %p158
        $region78: #{tpu_custom_call.1} parent=71 // pred_check_branch
          %462 = sbr.rel (%p460) target = $region80
        $region79: #{tpu_custom_call.1} parent=71 // pred_region
          %463 = dma.done [#allocation7], 512
        $region80: #{tpu_custom_call.1} parent=71 // pred_fallthru
          _
        // Predicated region
        $region81: #{tpu_custom_call.1} parent=71 // pred_check
          %p464 = pneg %p200
        $region82: #{tpu_custom_call.1} parent=71 // pred_check_branch
          %466 = sbr.rel (%p464) target = $region84
        $region83: #{tpu_custom_call.1} parent=71 // pred_region
          %467 = dma.done [#allocation7], 16
        $region84: #{tpu_custom_call.1} parent=71 // pred_fallthru
          _
        // Predicated region
        $region85: #{tpu_custom_call.1} parent=71 // pred_check
          %p468 = pneg %p221
        $region86: #{tpu_custom_call.1} parent=71 // pred_check_branch
          %470 = sbr.rel (%p468) target = $region88
        $region87: #{tpu_custom_call.1} parent=71 // pred_region
          %471 = dma.done [#allocation10], 16
        $region88: #{tpu_custom_call.1} parent=71 // pred_fallthru
          _
        // Predicated region
        $region89: #{tpu_custom_call.1} parent=71 // pred_check
          %p472 = pneg %p284
        $region90: #{tpu_custom_call.1} parent=71 // pred_check_branch
          %474 = sbr.rel (%p472) target = $region92
        $region91: #{tpu_custom_call.1} parent=71 // pred_region
          %475 = dma.done [#allocation10], 2048
        $region92: #{tpu_custom_call.1} parent=71 // pred_fallthru
          _
        %s476 = sand.u32 %s40, 1
        %s477 = scalar_lea.sflag [#allocation4], %s476
        %s478 = sand.u32 %s40, 1
        %s479 = smul.addr %s478, 128
        %s480 = scalar_lea.vmem [#allocation3], %s479
        %p481 = pneg %p53
        %p482 = pneg %p50
        %p483 = pneg %p74
        %p484 = pneg %p71
        %p485 = pneg %p95
        %p486 = pneg %p92
        %p487 = pneg %p116
        %p488 = pneg %p113
        %p489 = pneg %p137
        %p490 = pneg %p134
        %p491 = pneg %p158
        %p492 = pneg %p155
        %p493 = pneg %p179
        %p494 = pneg %p176
        %p495 = pneg %p200
        %p496 = pneg %p197
        %p497 = pneg %p221
        %p498 = pneg %p218
        %p499 = pneg %p242
        %p500 = pneg %p239
        %p501 = pneg %p263
        %p502 = pneg %p260
        %p503 = pneg %p284
        %p504 = pneg %p281
        %p505 = pneg %p305
        %p506 = pneg %p302
        %p507 = pneg %p331
        %p508 = pneg %p328
        %s509 = sand.u32 %s318, 1
        %s510 = scalar_lea.sflag [#allocation5], %s509
        %s511 = sand.u32 %s318, 1
        %s512 = smul.addr %s511, 128
        %s513 = scalar_lea.vmem [#allocation12], %s512
        %s514 = smul.u32 2, %s32
        %s515 = smul.u32 2, %s32
        %v517 = vld [vmem:[%s455] sm:$0xff]
        %v518 = vld [vmem:[%s455 + $0x8] sm:$0xff]
        %v519 = vld [vmem:[%s455 + $0x10] sm:$0xff]
        %v520 = vld [vmem:[%s455 + $0x18] sm:$0xff]
        %v521 = vld [vmem:[%s455 + $0x20] sm:$0xff]
        %v522 = vld [vmem:[%s455 + $0x28] sm:$0xff]
        %v523 = vld [vmem:[%s455 + $0x30] sm:$0xff]
        %v524 = vld [vmem:[%s455 + $0x38] sm:$0xff]
        %v525 = vld [vmem:[%s455 + $0x40] sm:$0xff]
        %v526 = vld [vmem:[%s455 + $0x48] sm:$0xff]
        %v527 = vld [vmem:[%s455 + $0x50] sm:$0xff]
        %v528 = vld [vmem:[%s455 + $0x58] sm:$0xff]
        %v529 = vld [vmem:[%s455 + $0x60] sm:$0xff]
        %v530 = vld [vmem:[%s455 + $0x68] sm:$0xff]
        %v531 = vld [vmem:[%s455 + $0x70] sm:$0xff]
        %v532 = vld [vmem:[%s455 + $0x78] sm:$0xff]
        %v533 = vld [vmem:[%s1] sm:$0x1]
        %v534 = vld [vmem:[%s2] sm:$0x1]
        %535 = vadd.xlane.f32.xlu0 %v517
        %v536 = vpop.xlane.xlu0 %535
        %537 = vadd.xlane.f32.xlu0 %v518
        %v538 = vpop.xlane.xlu0 %537
        %539 = vadd.xlane.f32.xlu0 %v519
        %v540 = vpop.xlane.xlu0 %539
        %541 = vadd.xlane.f32.xlu0 %v520
        %v542 = vpop.xlane.xlu0 %541
        %543 = vadd.xlane.f32.xlu0 %v521
        %v544 = vpop.xlane.xlu0 %543
        %545 = vadd.xlane.f32.xlu0 %v522
        %v546 = vpop.xlane.xlu0 %545
        %547 = vadd.xlane.f32.xlu0 %v523
        %v548 = vpop.xlane.xlu0 %547
        %549 = vadd.xlane.f32.xlu0 %v524
        %v550 = vpop.xlane.xlu0 %549
        %551 = vadd.xlane.f32.xlu0 %v525
        %v552 = vpop.xlane.xlu0 %551
        %553 = vadd.xlane.f32.xlu0 %v526
        %v554 = vpop.xlane.xlu0 %553
        %555 = vadd.xlane.f32.xlu0 %v527
        %v556 = vpop.xlane.xlu0 %555
        %557 = vadd.xlane.f32.xlu0 %v528
        %v558 = vpop.xlane.xlu0 %557
        %559 = vadd.xlane.f32.xlu0 %v529
        %v560 = vpop.xlane.xlu0 %559
        %561 = vadd.xlane.f32.xlu0 %v530
        %v562 = vpop.xlane.xlu0 %561
        %563 = vadd.xlane.f32.xlu0 %v531
        %v564 = vpop.xlane.xlu0 %563
        %565 = vadd.xlane.f32.xlu0 %v532
        %v566 = vpop.xlane.xlu0 %565
        %v567 = vrcp.pop 128.0
        %v568 = vmul.f32 %v536, %v567
        %v569 = vmul.f32 %v538, %v567
        %v570 = vmul.f32 %v540, %v567
        %v571 = vmul.f32 %v542, %v567
        %v572 = vmul.f32 %v544, %v567
        %v573 = vmul.f32 %v546, %v567
        %v574 = vmul.f32 %v548, %v567
        %v575 = vmul.f32 %v550, %v567
        %v576 = vmul.f32 %v552, %v567
        %v577 = vmul.f32 %v554, %v567
        %v578 = vmul.f32 %v556, %v567
        %v579 = vmul.f32 %v558, %v567
        %v580 = vmul.f32 %v560, %v567
        %v581 = vmul.f32 %v562, %v567
        %v582 = vmul.f32 %v564, %v567
        %v583 = vmul.f32 %v566, %v567
        %v584 = vsub.f32 %v517, %v568
        %v585 = vsub.f32 %v518, %v569
        %v586 = vsub.f32 %v519, %v570
        %v587 = vsub.f32 %v520, %v571
        %v588 = vsub.f32 %v521, %v572
        %v589 = vsub.f32 %v522, %v573
        %v590 = vsub.f32 %v523, %v574
        %v591 = vsub.f32 %v524, %v575
        %v592 = vsub.f32 %v525, %v576
        %v593 = vsub.f32 %v526, %v577
        %v594 = vsub.f32 %v527, %v578
        %v595 = vsub.f32 %v528, %v579
        %v596 = vsub.f32 %v529, %v580
        %v597 = vsub.f32 %v530, %v581
        %v598 = vsub.f32 %v531, %v582
        %v599 = vsub.f32 %v532, %v583
        %v600 = vmul.f32 %v584, %v584
        %v601 = vmul.f32 %v585, %v585
        %v602 = vmul.f32 %v586, %v586
        %v603 = vmul.f32 %v587, %v587
        %v604 = vmul.f32 %v588, %v588
        %v605 = vmul.f32 %v589, %v589
        %v606 = vmul.f32 %v590, %v590
        %v607 = vmul.f32 %v591, %v591
        %v608 = vmul.f32 %v592, %v592
        %v609 = vmul.f32 %v593, %v593
        %v610 = vmul.f32 %v594, %v594
        %v611 = vmul.f32 %v595, %v595
        %v612 = vmul.f32 %v596, %v596
        %v613 = vmul.f32 %v597, %v597
        %v614 = vmul.f32 %v598, %v598
        %v615 = vmul.f32 %v599, %v599
        %616 = vadd.xlane.f32.xlu0 %v600
        %v617 = vpop.xlane.xlu0 %616
        %618 = vadd.xlane.f32.xlu0 %v601
        %v619 = vpop.xlane.xlu0 %618
        %620 = vadd.xlane.f32.xlu0 %v602
        %v621 = vpop.xlane.xlu0 %620
        %622 = vadd.xlane.f32.xlu0 %v603
        %v623 = vpop.xlane.xlu0 %622
        %624 = vadd.xlane.f32.xlu0 %v604
        %v625 = vpop.xlane.xlu0 %624
        %626 = vadd.xlane.f32.xlu0 %v605
        %v627 = vpop.xlane.xlu0 %626
        %628 = vadd.xlane.f32.xlu0 %v606
        %v629 = vpop.xlane.xlu0 %628
        %630 = vadd.xlane.f32.xlu0 %v607
        %v631 = vpop.xlane.xlu0 %630
        %632 = vadd.xlane.f32.xlu0 %v608
        %v633 = vpop.xlane.xlu0 %632
        %634 = vadd.xlane.f32.xlu0 %v609
        %v635 = vpop.xlane.xlu0 %634
        %636 = vadd.xlane.f32.xlu0 %v610
        %v637 = vpop.xlane.xlu0 %636
        %638 = vadd.xlane.f32.xlu0 %v611
        %v639 = vpop.xlane.xlu0 %638
        %640 = vadd.xlane.f32.xlu0 %v612
        %v641 = vpop.xlane.xlu0 %640
        %642 = vadd.xlane.f32.xlu0 %v613
        %v643 = vpop.xlane.xlu0 %642
        %644 = vadd.xlane.f32.xlu0 %v614
        %v645 = vpop.xlane.xlu0 %644
        %646 = vadd.xlane.f32.xlu0 %v615
        %v647 = vpop.xlane.xlu0 %646
        %v648 = vmul.f32 %v617, %v567
        %v649 = vmul.f32 %v619, %v567
        %v650 = vmul.f32 %v621, %v567
        %v651 = vmul.f32 %v623, %v567
        %v652 = vmul.f32 %v625, %v567
        %v653 = vmul.f32 %v627, %v567
        %v654 = vmul.f32 %v629, %v567
        %v655 = vmul.f32 %v631, %v567
        %v656 = vmul.f32 %v633, %v567
        %v657 = vmul.f32 %v635, %v567
        %v658 = vmul.f32 %v637, %v567
        %v659 = vmul.f32 %v639, %v567
        %v660 = vmul.f32 %v641, %v567
        %v661 = vmul.f32 %v643, %v567
        %v662 = vmul.f32 %v645, %v567
        %v663 = vmul.f32 %v647, %v567
        %v664 = vadd.f32 %v648, 1e-05
        %v665 = vadd.f32 %v649, 1e-05
        %v666 = vadd.f32 %v650, 1e-05
        %v667 = vadd.f32 %v651, 1e-05
        %v668 = vadd.f32 %v652, 1e-05
        %v669 = vadd.f32 %v653, 1e-05
        %v670 = vadd.f32 %v654, 1e-05
        %v671 = vadd.f32 %v655, 1e-05
        %v672 = vadd.f32 %v656, 1e-05
        %v673 = vadd.f32 %v657, 1e-05
        %v674 = vadd.f32 %v658, 1e-05
        %v675 = vadd.f32 %v659, 1e-05
        %v676 = vadd.f32 %v660, 1e-05
        %v677 = vadd.f32 %v661, 1e-05
        %v678 = vadd.f32 %v662, 1e-05
        %v679 = vadd.f32 %v663, 1e-05
        %v680 = vrsqrt.pop %v664
        %v681 = vrsqrt.pop %v665
        %v682 = vrsqrt.pop %v666
        %v683 = vrsqrt.pop %v667
        %v684 = vrsqrt.pop %v668
        %v685 = vrsqrt.pop %v669
        %v686 = vrsqrt.pop %v670
        %v687 = vrsqrt.pop %v671
        %v688 = vrsqrt.pop %v672
        %v689 = vrsqrt.pop %v673
        %v690 = vrsqrt.pop %v674
        %v691 = vrsqrt.pop %v675
        %v692 = vrsqrt.pop %v676
        %v693 = vrsqrt.pop %v677
        %v694 = vrsqrt.pop %v678
        %v695 = vrsqrt.pop %v679
        %v696 = vmul.f32 %v584, %v680
        %v697 = vmul.f32 %v585, %v681
        %v698 = vmul.f32 %v586, %v682
        %v699 = vmul.f32 %v587, %v683
        %v700 = vmul.f32 %v588, %v684
        %v701 = vmul.f32 %v589, %v685
        %v702 = vmul.f32 %v590, %v686
        %v703 = vmul.f32 %v591, %v687
        %v704 = vmul.f32 %v592, %v688
        %v705 = vmul.f32 %v593, %v689
        %v706 = vmul.f32 %v594, %v690
        %v707 = vmul.f32 %v595, %v691
        %v708 = vmul.f32 %v596, %v692
        %v709 = vmul.f32 %v597, %v693
        %v710 = vmul.f32 %v598, %v694
        %v711 = vmul.f32 %v599, %v695
        %v713 = vlaneseq
        %v714 = vshrl.u32 %v713, 7
        %v715 = vsub.s32 0, %v714
        %v716 = vrot.slane %v533, %v715
        %v718 = vmul.f32 %v696, %v716
        %v719 = vmul.f32 %v697, %v716
        %v720 = vmul.f32 %v698, %v716
        %v721 = vmul.f32 %v699, %v716
        %v722 = vmul.f32 %v700, %v716
        %v723 = vmul.f32 %v701, %v716
        %v724 = vmul.f32 %v702, %v716
        %v725 = vmul.f32 %v703, %v716
        %v726 = vmul.f32 %v704, %v716
        %v727 = vmul.f32 %v705, %v716
        %v728 = vmul.f32 %v706, %v716
        %v729 = vmul.f32 %v707, %v716
        %v730 = vmul.f32 %v708, %v716
        %v731 = vmul.f32 %v709, %v716
        %v732 = vmul.f32 %v710, %v716
        %v733 = vmul.f32 %v711, %v716
        %v735 = vlaneseq
        %v736 = vshrl.u32 %v735, 7
        %v737 = vsub.s32 0, %v736
        %v738 = vrot.slane %v534, %v737
        %v740 = vadd.f32 %v718, %v738
        %v741 = vadd.f32 %v719, %v738
        %v742 = vadd.f32 %v720, %v738
        %v743 = vadd.f32 %v721, %v738
        %v744 = vadd.f32 %v722, %v738
        %v745 = vadd.f32 %v723, %v738
        %v746 = vadd.f32 %v724, %v738
        %v747 = vadd.f32 %v725, %v738
        %v748 = vadd.f32 %v726, %v738
        %v749 = vadd.f32 %v727, %v738
        %v750 = vadd.f32 %v728, %v738
        %v751 = vadd.f32 %v729, %v738
        %v752 = vadd.f32 %v730, %v738
        %v753 = vadd.f32 %v731, %v738
        %v754 = vadd.f32 %v732, %v738
        %v755 = vadd.f32 %v733, %v738
        %v756 = vpack.c.bf16 %v741, %v740
        %v757 = vpack.c.bf16 %v743, %v742
        %v758 = vpack.c.bf16 %v745, %v744
        %v759 = vpack.c.bf16 %v747, %v746
        %v760 = vpack.c.bf16 %v749, %v748
        %v761 = vpack.c.bf16 %v751, %v750
        %v762 = vpack.c.bf16 %v753, %v752
        %v763 = vpack.c.bf16 %v755, %v754
        %v764 = vld [vmem:[%s4] sm:$0xff]
        %v765 = vld [vmem:[%s4 + $0x8] sm:$0xff]
        %v766 = vld [vmem:[%s4 + $0x10] sm:$0xff]
        %v767 = vld [vmem:[%s4 + $0x18] sm:$0xff]
        %v768 = vld [vmem:[%s4 + $0x20] sm:$0xff]
        %v769 = vld [vmem:[%s4 + $0x28] sm:$0xff]
        %v770 = vld [vmem:[%s4 + $0x30] sm:$0xff]
        %v771 = vld [vmem:[%s4 + $0x38] sm:$0xff]
        %v772 = vld [vmem:[%s6] sm:$0xff]
        %v773 = vld [vmem:[%s6 + $0x8] sm:$0xff]
        %v774 = vld [vmem:[%s6 + $0x10] sm:$0xff]
        %v775 = vld [vmem:[%s6 + $0x18] sm:$0xff]
        %v776 = vld [vmem:[%s6 + $0x20] sm:$0xff]
        %v777 = vld [vmem:[%s6 + $0x28] sm:$0xff]
        %v778 = vld [vmem:[%s6 + $0x30] sm:$0xff]
        %v779 = vld [vmem:[%s6 + $0x38] sm:$0xff]
        %v780 = vld [vmem:[%s3] sm:$0xf]
        %v781 = vld [vmem:[%s3 + $0x4] sm:$0xf]
        %v782 = vld [vmem:[%s3 + $0x8] sm:$0xf]
        %v783 = vld [vmem:[%s3 + $0xc] sm:$0xf]
        %v784 = vld [vmem:[%s3 + $0x10] sm:$0xf]
        %v785 = vld [vmem:[%s3 + $0x14] sm:$0xf]
        %v786 = vld [vmem:[%s3 + $0x18] sm:$0xf]
        %v787 = vld [vmem:[%s3 + $0x1c] sm:$0xf]
        %789 = vset.pattern.permute.xlu0 0
        %790 = vperm.xlu0 %789, %v764
        %v791 = vpop.permute.xlu0 %790
        %794 = vset.pattern.permute.xlu0 0
        %795 = vperm.xlu0 %794, %v765
        %v796 = vpop.permute.xlu0 %795
        %799 = vset.pattern.permute.xlu0 0
        %800 = vperm.xlu0 %799, %v766
        %v801 = vpop.permute.xlu0 %800
        %804 = vset.pattern.permute.xlu0 0
        %805 = vperm.xlu0 %804, %v767
        %v806 = vpop.permute.xlu0 %805
        %809 = vset.pattern.permute.xlu0 0
        %810 = vperm.xlu0 %809, %v768
        %v811 = vpop.permute.xlu0 %810
        %814 = vset.pattern.permute.xlu0 0
        %815 = vperm.xlu0 %814, %v769
        %v816 = vpop.permute.xlu0 %815
        %819 = vset.pattern.permute.xlu0 0
        %820 = vperm.xlu0 %819, %v770
        %v821 = vpop.permute.xlu0 %820
        %824 = vset.pattern.permute.xlu0 0
        %825 = vperm.xlu0 %824, %v771
        %v826 = vpop.permute.xlu0 %825
        %v836 = vunpack.c.l.b16 %v780
        %v837 = vunpack.c.l.b16 %v781
        %v838 = vunpack.c.l.b16 %v782
        %v839 = vunpack.c.l.b16 %v783
        %v840 = vunpack.c.l.b16 %v784
        %v841 = vunpack.c.l.b16 %v785
        %v842 = vunpack.c.l.b16 %v786
        %v843 = vunpack.c.l.b16 %v787
        %v844 = vpack.c.b16 %v837, %v836
        %v845 = vpack.c.b16 %v839, %v838
        %v846 = vpack.c.b16 %v841, %v840
        %v847 = vpack.c.b16 %v843, %v842
        %vm848 = vcmask 523264
        %v850 = vsel %vm848, %v844, 0
        %v853 = vsel %vm848, %v845, 0
        %v856 = vsel %vm848, %v846, 0
        %v859 = vsel %vm848, %v847, 0
        %861 = vmatprep.subr.bf16.mxu0 0
        %862 = vmatpush1.bf16.msra.mxu0 %v756
        %863 = vmatprep.subr.bf16.mxu0 0
        %864 = vmatpush1.bf16.msra.mxu0 %v757
        %865 = vmatprep.subr.bf16.mxu0 0
        %866 = vmatpush1.bf16.msra.mxu0 %v758
        %867 = vmatprep.subr.bf16.mxu0 0
        %868 = vmatpush1.bf16.msra.mxu0 %v759
        %869 = vmatprep.subr.bf16.mxu0 0
        %870 = vmatpush1.bf16.msra.mxu0 0
        %871 = vmatprep.subr.bf16.mxu0 0
        %872 = vmatpush1.bf16.msra.mxu0 0
        %873 = vmatprep.subr.bf16.mxu0 0
        %874 = vmatpush1.bf16.msra.mxu0 0
        %875 = vmatprep.subr.bf16.mxu0 0
        %876 = vmatpush1.bf16.msra.mxu0 0
        %877 = vmatprep.subr.bf16.mxu0 0
        %878 = vmatpush1.bf16.msra.mxu0 0
        %879 = vmatprep.subr.bf16.mxu0 0
        %880 = vmatpush1.bf16.msra.mxu0 0
        %881 = vmatprep.subr.bf16.mxu0 0
        %882 = vmatpush1.bf16.msra.mxu0 0
        %883 = vmatprep.subr.bf16.mxu0 0
        %884 = vmatpush1.bf16.msra.mxu0 0
        %885 = vmatprep.subr.bf16.mxu0 0
        %886 = vmatpush1.bf16.msra.mxu0 0
        %887 = vmatprep.subr.bf16.mxu0 0
        %888 = vmatpush1.bf16.msra.mxu0 0
        %889 = vmatprep.subr.bf16.mxu0 0
        %890 = vmatpush1.bf16.msra.mxu0 0
        %891 = vmatprep.subr.bf16.mxu0 0
        %892 = vmatpush1.bf16.msra.mxu0 0
        %893 = vmatprep.mubr.bf16.mxu0 0
        %894 = vmatmul.mubr.bf16.gmra.mrb[0].mxu0 %v850
        %v895 = vpop.f32.mrb[0].mxu0
        %v896 = vadd.f32 %v791, %v895
        %v897 = vpop.f32.mrb[0].mxu0
        %v898 = vpop.f32.mrb[0].mxu0
        %v899 = vadd.f32 %v796, %v898
        %v900 = vpop.f32.mrb[0].mxu0
        %901 = vmatprep.mubr.bf16.mxu0 0
        %902 = vmatmul.mubr.bf16.gmra.mrb[0].mxu0 %v853
        %v903 = vpop.f32.mrb[0].mxu0
        %v904 = vadd.f32 %v801, %v903
        %v905 = vpop.f32.mrb[0].mxu0
        %v906 = vpop.f32.mrb[0].mxu0
        %v907 = vadd.f32 %v806, %v906
        %v908 = vpop.f32.mrb[0].mxu0
        %909 = vmatprep.mubr.bf16.mxu0 0
        %910 = vmatmul.mubr.bf16.gmra.mrb[0].mxu0 %v856
        %v911 = vpop.f32.mrb[0].mxu0
        %v912 = vadd.f32 %v811, %v911
        %v913 = vpop.f32.mrb[0].mxu0
        %v914 = vpop.f32.mrb[0].mxu0
        %v915 = vadd.f32 %v816, %v914
        %v916 = vpop.f32.mrb[0].mxu0
        %917 = vmatprep.mubr.bf16.mxu0 0
        %918 = vmatmul.mubr.bf16.gmra.mrb[0].mxu0 %v859
        %v919 = vpop.f32.mrb[0].mxu0
        %v920 = vadd.f32 %v821, %v919
        %v921 = vpop.f32.mrb[0].mxu0
        %v922 = vpop.f32.mrb[0].mxu0
        %v923 = vadd.f32 %v826, %v922
        %v924 = vpop.f32.mrb[0].mxu0
        %925 = vdwg.mxu0
        %v926 = vmax.f32 %v896, 0.0
        %v927 = vmax.f32 %v899, 0.0
        %v928 = vmax.f32 %v904, 0.0
        %v929 = vmax.f32 %v907, 0.0
        %v930 = vmax.f32 %v912, 0.0
        %v931 = vmax.f32 %v915, 0.0
        %v932 = vmax.f32 %v920, 0.0
        %v933 = vmax.f32 %v923, 0.0
        %v934 = vpack.c.bf16 %v927, %v926
        %v935 = vpack.c.bf16 %v929, %v928
        %v936 = vpack.c.bf16 %v931, %v930
        %v937 = vpack.c.bf16 %v933, %v932
        %v938 = vld [vmem:[#allocation6] sm:$0xf]
        %v939 = vld [vmem:[#allocation6 + $0x4] sm:$0xf]
        %v940 = vld [vmem:[#allocation6 + $0x8] sm:$0xf]
        %v941 = vld [vmem:[#allocation6 + $0xc] sm:$0xf]
        %v942 = vld [vmem:[#allocation6 + $0x10] sm:$0xf]
        %v943 = vld [vmem:[#allocation6 + $0x14] sm:$0xf]
        %v944 = vld [vmem:[#allocation6 + $0x18] sm:$0xf]
        %v945 = vld [vmem:[#allocation6 + $0x1c] sm:$0xf]
        %947 = vset.pattern.permute.xlu0 0
        %948 = vperm.xlu0 %947, %v772
        %v949 = vpop.permute.xlu0 %948
        %952 = vset.pattern.permute.xlu0 0
        %953 = vperm.xlu0 %952, %v773
        %v954 = vpop.permute.xlu0 %953
        %957 = vset.pattern.permute.xlu0 0
        %958 = vperm.xlu0 %957, %v774
        %v959 = vpop.permute.xlu0 %958
        %962 = vset.pattern.permute.xlu0 0
        %963 = vperm.xlu0 %962, %v775
        %v964 = vpop.permute.xlu0 %963
        %967 = vset.pattern.permute.xlu0 0
        %968 = vperm.xlu0 %967, %v776
        %v969 = vpop.permute.xlu0 %968
        %972 = vset.pattern.permute.xlu0 0
        %973 = vperm.xlu0 %972, %v777
        %v974 = vpop.permute.xlu0 %973
        %977 = vset.pattern.permute.xlu0 0
        %978 = vperm.xlu0 %977, %v778
        %v979 = vpop.permute.xlu0 %978
        %982 = vset.pattern.permute.xlu0 0
        %983 = vperm.xlu0 %982, %v779
        %v984 = vpop.permute.xlu0 %983
        %v994 = vunpack.c.l.b16 %v938
        %v995 = vunpack.c.l.b16 %v939
        %v996 = vunpack.c.l.b16 %v940
        %v997 = vunpack.c.l.b16 %v941
        %v998 = vunpack.c.l.b16 %v942
        %v999 = vunpack.c.l.b16 %v943
        %v1000 = vunpack.c.l.b16 %v944
        %v1001 = vunpack.c.l.b16 %v945
        %v1002 = vpack.c.b16 %v995, %v994
        %v1003 = vpack.c.b16 %v997, %v996
        %v1004 = vpack.c.b16 %v999, %v998
        %v1005 = vpack.c.b16 %v1001, %v1000
        %v1007 = vsel %vm848, %v1002, 0
        %v1010 = vsel %vm848, %v1003, 0
        %v1013 = vsel %vm848, %v1004, 0
        %v1016 = vsel %vm848, %v1005, 0
        %1018 = vmatprep.subr.bf16.mxu0 0
        %1019 = vmatpush1.bf16.msra.mxu0 %v934
        %1020 = vmatprep.subr.bf16.mxu0 0
        %1021 = vmatpush1.bf16.msra.mxu0 %v935
        %1022 = vmatprep.subr.bf16.mxu0 0
        %1023 = vmatpush1.bf16.msra.mxu0 %v936
        %1024 = vmatprep.subr.bf16.mxu0 0
        %1025 = vmatpush1.bf16.msra.mxu0 %v937
        %1026 = vmatprep.subr.bf16.mxu0 0
        %1027 = vmatpush1.bf16.msra.mxu0 0
        %1028 = vmatprep.subr.bf16.mxu0 0
        %1029 = vmatpush1.bf16.msra.mxu0 0
        %1030 = vmatprep.subr.bf16.mxu0 0
        %1031 = vmatpush1.bf16.msra.mxu0 0
        %1032 = vmatprep.subr.bf16.mxu0 0
        %1033 = vmatpush1.bf16.msra.mxu0 0
        %1034 = vmatprep.subr.bf16.mxu0 0
        %1035 = vmatpush1.bf16.msra.mxu0 0
        %1036 = vmatprep.subr.bf16.mxu0 0
        %1037 = vmatpush1.bf16.msra.mxu0 0
        %1038 = vmatprep.subr.bf16.mxu0 0
        %1039 = vmatpush1.bf16.msra.mxu0 0
        %1040 = vmatprep.subr.bf16.mxu0 0
        %1041 = vmatpush1.bf16.msra.mxu0 0
        %1042 = vmatprep.subr.bf16.mxu0 0
        %1043 = vmatpush1.bf16.msra.mxu0 0
        %1044 = vmatprep.subr.bf16.mxu0 0
        %1045 = vmatpush1.bf16.msra.mxu0 0
        %1046 = vmatprep.subr.bf16.mxu0 0
        %1047 = vmatpush1.bf16.msra.mxu0 0
        %1048 = vmatprep.subr.bf16.mxu0 0
        %1049 = vmatpush1.bf16.msra.mxu0 0
        %1050 = vmatprep.mubr.bf16.mxu0 0
        %1051 = vmatmul.mubr.bf16.gmra.mrb[0].mxu0 %v1007
        %v1052 = vpop.f32.mrb[0].mxu0
        %v1053 = vadd.f32 %v949, %v1052
        %v1054 = vpop.f32.mrb[0].mxu0
        %v1055 = vpop.f32.mrb[0].mxu0
        %v1056 = vadd.f32 %v954, %v1055
        %v1057 = vpop.f32.mrb[0].mxu0
        %1058 = vmatprep.mubr.bf16.mxu0 0
        %1059 = vmatmul.mubr.bf16.gmra.mrb[0].mxu0 %v1010
        %v1060 = vpop.f32.mrb[0].mxu0
        %v1061 = vadd.f32 %v959, %v1060
        %v1062 = vpop.f32.mrb[0].mxu0
        %v1063 = vpop.f32.mrb[0].mxu0
        %v1064 = vadd.f32 %v964, %v1063
        %v1065 = vpop.f32.mrb[0].mxu0
        %1066 = vmatprep.mubr.bf16.mxu0 0
        %1067 = vmatmul.mubr.bf16.gmra.mrb[0].mxu0 %v1013
        %v1068 = vpop.f32.mrb[0].mxu0
        %v1069 = vadd.f32 %v969, %v1068
        %v1070 = vpop.f32.mrb[0].mxu0
        %v1071 = vpop.f32.mrb[0].mxu0
        %v1072 = vadd.f32 %v974, %v1071
        %v1073 = vpop.f32.mrb[0].mxu0
        %1074 = vmatprep.mubr.bf16.mxu0 0
        %1075 = vmatmul.mubr.bf16.gmra.mrb[0].mxu0 %v1016
        %v1076 = vpop.f32.mrb[0].mxu0
        %v1077 = vadd.f32 %v979, %v1076
        %v1078 = vpop.f32.mrb[0].mxu0
        %v1079 = vpop.f32.mrb[0].mxu0
        %v1080 = vadd.f32 %v984, %v1079
        %v1081 = vpop.f32.mrb[0].mxu0
        %1082 = vdwg.mxu0
        %v1083 = vadd.f32 %v517, %v1053
        %v1084 = vadd.f32 %v518, %v1056
        %v1085 = vadd.f32 %v519, %v1061
        %v1086 = vadd.f32 %v520, %v1064
        %v1087 = vadd.f32 %v521, %v1069
        %v1088 = vadd.f32 %v522, %v1072
        %v1089 = vadd.f32 %v523, %v1077
        %v1090 = vadd.f32 %v524, %v1080
        %1091 = vst [vmem:[#allocation2] sm:$0xff] %v1083
        %1092 = vst [vmem:[#allocation2 + $0x8] sm:$0xff] %v1084
        %1093 = vst [vmem:[#allocation2 + $0x10] sm:$0xff] %v1085
        %1094 = vst [vmem:[#allocation2 + $0x18] sm:$0xff] %v1086
        %1095 = vst [vmem:[#allocation2 + $0x20] sm:$0xff] %v1087
        %1096 = vst [vmem:[#allocation2 + $0x28] sm:$0xff] %v1088
        %1097 = vst [vmem:[#allocation2 + $0x30] sm:$0xff] %v1089
        %1098 = vst [vmem:[#allocation2 + $0x38] sm:$0xff] %v1090
        %v1099 = vld [vmem:[%s3] sm:$0xf]
        %v1100 = vld [vmem:[%s3 + $0x4] sm:$0xf]
        %v1101 = vld [vmem:[%s3 + $0x8] sm:$0xf]
        %v1102 = vld [vmem:[%s3 + $0xc] sm:$0xf]
        %v1103 = vld [vmem:[%s3 + $0x10] sm:$0xf]
        %v1104 = vld [vmem:[%s3 + $0x14] sm:$0xf]
        %v1105 = vld [vmem:[%s3 + $0x18] sm:$0xf]
        %v1106 = vld [vmem:[%s3 + $0x1c] sm:$0xf]
        %v1115 = vunpack.c.l.b16 %v1099
        %v1116 = vunpack.c.l.b16 %v1100
        %v1117 = vunpack.c.l.b16 %v1101
        %v1118 = vunpack.c.l.b16 %v1102
        %v1119 = vunpack.c.l.b16 %v1103
        %v1120 = vunpack.c.l.b16 %v1104
        %v1121 = vunpack.c.l.b16 %v1105
        %v1122 = vunpack.c.l.b16 %v1106
        %v1123 = vpack.c.b16 %v1116, %v1115
        %v1124 = vpack.c.b16 %v1118, %v1117
        %v1125 = vpack.c.b16 %v1120, %v1119
        %v1126 = vpack.c.b16 %v1122, %v1121
        %v1128 = vsel %vm848, %v1123, 0
        %v1131 = vsel %vm848, %v1124, 0
        %v1134 = vsel %vm848, %v1125, 0
        %v1137 = vsel %vm848, %v1126, 0
        %1139 = vmatprep.subr.bf16.mxu0 0
        %1140 = vmatpush1.bf16.msra.mxu0 %v760
        %1141 = vmatprep.subr.bf16.mxu0 0
        %1142 = vmatpush1.bf16.msra.mxu0 %v761
        %1143 = vmatprep.subr.bf16.mxu0 0
        %1144 = vmatpush1.bf16.msra.mxu0 %v762
        %1145 = vmatprep.subr.bf16.mxu0 0
        %1146 = vmatpush1.bf16.msra.mxu0 %v763
        %1147 = vmatprep.subr.bf16.mxu0 0
        %1148 = vmatpush1.bf16.msra.mxu0 0
        %1149 = vmatprep.subr.bf16.mxu0 0
        %1150 = vmatpush1.bf16.msra.mxu0 0
        %1151 = vmatprep.subr.bf16.mxu0 0
        %1152 = vmatpush1.bf16.msra.mxu0 0
        %1153 = vmatprep.subr.bf16.mxu0 0
        %1154 = vmatpush1.bf16.msra.mxu0 0
        %1155 = vmatprep.subr.bf16.mxu0 0
        %1156 = vmatpush1.bf16.msra.mxu0 0
        %1157 = vmatprep.subr.bf16.mxu0 0
        %1158 = vmatpush1.bf16.msra.mxu0 0
        %1159 = vmatprep.subr.bf16.mxu0 0
        %1160 = vmatpush1.bf16.msra.mxu0 0
        %1161 = vmatprep.subr.bf16.mxu0 0
        %1162 = vmatpush1.bf16.msra.mxu0 0
        %1163 = vmatprep.subr.bf16.mxu0 0
        %1164 = vmatpush1.bf16.msra.mxu0 0
        %1165 = vmatprep.subr.bf16.mxu0 0
        %1166 = vmatpush1.bf16.msra.mxu0 0
        %1167 = vmatprep.subr.bf16.mxu0 0
        %1168 = vmatpush1.bf16.msra.mxu0 0
        %1169 = vmatprep.subr.bf16.mxu0 0
        %1170 = vmatpush1.bf16.msra.mxu0 0
        %1171 = vmatprep.mubr.bf16.mxu0 0
        %1172 = vmatmul.mubr.bf16.gmra.mrb[0].mxu0 %v1128
        %v1173 = vpop.f32.mrb[0].mxu0
        %v1174 = vadd.f32 %v791, %v1173
        %v1175 = vpop.f32.mrb[0].mxu0
        %v1176 = vpop.f32.mrb[0].mxu0
        %v1177 = vadd.f32 %v796, %v1176
        %v1178 = vpop.f32.mrb[0].mxu0
        %1179 = vmatprep.mubr.bf16.mxu0 0
        %1180 = vmatmul.mubr.bf16.gmra.mrb[0].mxu0 %v1131
        %v1181 = vpop.f32.mrb[0].mxu0
        %v1182 = vadd.f32 %v801, %v1181
        %v1183 = vpop.f32.mrb[0].mxu0
        %v1184 = vpop.f32.mrb[0].mxu0
        %v1185 = vadd.f32 %v806, %v1184
        %v1186 = vpop.f32.mrb[0].mxu0
        %1187 = vmatprep.mubr.bf16.mxu0 0
        %1188 = vmatmul.mubr.bf16.gmra.mrb[0].mxu0 %v1134
        %v1189 = vpop.f32.mrb[0].mxu0
        %v1190 = vadd.f32 %v811, %v1189
        %v1191 = vpop.f32.mrb[0].mxu0
        %v1192 = vpop.f32.mrb[0].mxu0
        %v1193 = vadd.f32 %v816, %v1192
        %v1194 = vpop.f32.mrb[0].mxu0
        %1195 = vmatprep.mubr.bf16.mxu0 0
        %1196 = vmatmul.mubr.bf16.gmra.mrb[0].mxu0 %v1137
        %v1197 = vpop.f32.mrb[0].mxu0
        %v1198 = vadd.f32 %v821, %v1197
        %v1199 = vpop.f32.mrb[0].mxu0
        %v1200 = vpop.f32.mrb[0].mxu0
        %v1201 = vadd.f32 %v826, %v1200
        %v1202 = vpop.f32.mrb[0].mxu0
        %1203 = vdwg.mxu0
        %v1204 = vmax.f32 %v1174, 0.0
        %v1205 = vmax.f32 %v1177, 0.0
        %v1206 = vmax.f32 %v1182, 0.0
        %v1207 = vmax.f32 %v1185, 0.0
        %v1208 = vmax.f32 %v1190, 0.0
        %v1209 = vmax.f32 %v1193, 0.0
        %v1210 = vmax.f32 %v1198, 0.0
        %v1211 = vmax.f32 %v1201, 0.0
        %v1212 = vpack.c.bf16 %v1205, %v1204
        %v1213 = vpack.c.bf16 %v1207, %v1206
        %v1214 = vpack.c.bf16 %v1209, %v1208
        %v1215 = vpack.c.bf16 %v1211, %v1210
        %v1216 = vld [vmem:[#allocation6] sm:$0xf]
        %v1217 = vld [vmem:[#allocation6 + $0x4] sm:$0xf]
        %v1218 = vld [vmem:[#allocation6 + $0x8] sm:$0xf]
        %v1219 = vld [vmem:[#allocation6 + $0xc] sm:$0xf]
        %v1220 = vld [vmem:[#allocation6 + $0x10] sm:$0xf]
        %v1221 = vld [vmem:[#allocation6 + $0x14] sm:$0xf]
        %v1222 = vld [vmem:[#allocation6 + $0x18] sm:$0xf]
        %v1223 = vld [vmem:[#allocation6 + $0x1c] sm:$0xf]
        %v1232 = vunpack.c.l.b16 %v1216
        %v1233 = vunpack.c.l.b16 %v1217
        %v1234 = vunpack.c.l.b16 %v1218
        %v1235 = vunpack.c.l.b16 %v1219
        %v1236 = vunpack.c.l.b16 %v1220
        %v1237 = vunpack.c.l.b16 %v1221
        %v1238 = vunpack.c.l.b16 %v1222
        %v1239 = vunpack.c.l.b16 %v1223
        %v1240 = vpack.c.b16 %v1233, %v1232
        %v1241 = vpack.c.b16 %v1235, %v1234
        %v1242 = vpack.c.b16 %v1237, %v1236
        %v1243 = vpack.c.b16 %v1239, %v1238
        %v1245 = vsel %vm848, %v1240, 0
        %v1248 = vsel %vm848, %v1241, 0
        %v1251 = vsel %vm848, %v1242, 0
        %v1254 = vsel %vm848, %v1243, 0
        %1256 = vmatprep.subr.bf16.mxu0 0
        %1257 = vmatpush1.bf16.msra.mxu0 %v1212
        %1258 = vmatprep.subr.bf16.mxu0 0
        %1259 = vmatpush1.bf16.msra.mxu0 %v1213
        %1260 = vmatprep.subr.bf16.mxu0 0
        %1261 = vmatpush1.bf16.msra.mxu0 %v1214
        %1262 = vmatprep.subr.bf16.mxu0 0
        %1263 = vmatpush1.bf16.msra.mxu0 %v1215
        %1264 = vmatprep.subr.bf16.mxu0 0
        %1265 = vmatpush1.bf16.msra.mxu0 0
        %1266 = vmatprep.subr.bf16.mxu0 0
        %1267 = vmatpush1.bf16.msra.mxu0 0
        %1268 = vmatprep.subr.bf16.mxu0 0
        %1269 = vmatpush1.bf16.msra.mxu0 0
        %1270 = vmatprep.subr.bf16.mxu0 0
        %1271 = vmatpush1.bf16.msra.mxu0 0
        %1272 = vmatprep.subr.bf16.mxu0 0
        %1273 = vmatpush1.bf16.msra.mxu0 0
        %1274 = vmatprep.subr.bf16.mxu0 0
        %1275 = vmatpush1.bf16.msra.mxu0 0
        %1276 = vmatprep.subr.bf16.mxu0 0
        %1277 = vmatpush1.bf16.msra.mxu0 0
        %1278 = vmatprep.subr.bf16.mxu0 0
        %1279 = vmatpush1.bf16.msra.mxu0 0
        %1280 = vmatprep.subr.bf16.mxu0 0
        %1281 = vmatpush1.bf16.msra.mxu0 0
        %1282 = vmatprep.subr.bf16.mxu0 0
        %1283 = vmatpush1.bf16.msra.mxu0 0
        %1284 = vmatprep.subr.bf16.mxu0 0
        %1285 = vmatpush1.bf16.msra.mxu0 0
        %1286 = vmatprep.subr.bf16.mxu0 0
        %1287 = vmatpush1.bf16.msra.mxu0 0
        %1288 = vmatprep.mubr.bf16.mxu0 0
        %1289 = vmatmul.mubr.bf16.gmra.mrb[0].mxu0 %v1245
        %v1290 = vpop.f32.mrb[0].mxu0
        %v1291 = vadd.f32 %v949, %v1290
        %v1292 = vpop.f32.mrb[0].mxu0
        %v1293 = vpop.f32.mrb[0].mxu0
        %v1294 = vadd.f32 %v954, %v1293
        %v1295 = vpop.f32.mrb[0].mxu0
        %1296 = vmatprep.mubr.bf16.mxu0 0
        %1297 = vmatmul.mubr.bf16.gmra.mrb[0].mxu0 %v1248
        %v1298 = vpop.f32.mrb[0].mxu0
        %v1299 = vadd.f32 %v959, %v1298
        %v1300 = vpop.f32.mrb[0].mxu0
        %v1301 = vpop.f32.mrb[0].mxu0
        %v1302 = vadd.f32 %v964, %v1301
        %v1303 = vpop.f32.mrb[0].mxu0
        %1304 = vmatprep.mubr.bf16.mxu0 0
        %1305 = vmatmul.mubr.bf16.gmra.mrb[0].mxu0 %v1251
        %v1306 = vpop.f32.mrb[0].mxu0
        %v1307 = vadd.f32 %v969, %v1306
        %v1308 = vpop.f32.mrb[0].mxu0
        %v1309 = vpop.f32.mrb[0].mxu0
        %v1310 = vadd.f32 %v974, %v1309
        %v1311 = vpop.f32.mrb[0].mxu0
        %1312 = vmatprep.mubr.bf16.mxu0 0
        %1313 = vmatmul.mubr.bf16.gmra.mrb[0].mxu0 %v1254
        %v1314 = vpop.f32.mrb[0].mxu0
        %v1315 = vadd.f32 %v979, %v1314
        %v1316 = vpop.f32.mrb[0].mxu0
        %v1317 = vpop.f32.mrb[0].mxu0
        %v1318 = vadd.f32 %v984, %v1317
        %v1319 = vpop.f32.mrb[0].mxu0
        %1320 = vdwg.mxu0
        %v1321 = vadd.f32 %v525, %v1291
        %v1322 = vadd.f32 %v526, %v1294
        %v1323 = vadd.f32 %v527, %v1299
        %v1324 = vadd.f32 %v528, %v1302
        %v1325 = vadd.f32 %v529, %v1307
        %v1326 = vadd.f32 %v530, %v1310
        %v1327 = vadd.f32 %v531, %v1315
        %v1328 = vadd.f32 %v532, %v1318
        %s1329 = scalar_lea.vmem [#allocation2], 64
        %1330 = vst [vmem:[%s1329] sm:$0xff] %v1321
        %1331 = vst [vmem:[%s1329 + $0x8] sm:$0xff] %v1322
        %1332 = vst [vmem:[%s1329 + $0x10] sm:$0xff] %v1323
        %1333 = vst [vmem:[%s1329 + $0x18] sm:$0xff] %v1324
        %1334 = vst [vmem:[%s1329 + $0x20] sm:$0xff] %v1325
        %1335 = vst [vmem:[%s1329 + $0x28] sm:$0xff] %v1326
        %1336 = vst [vmem:[%s1329 + $0x30] sm:$0xff] %v1327
        %1337 = vst [vmem:[%s1329 + $0x38] sm:$0xff] %v1328
        %v1338 = vld [vmem:[#allocation2] sm:$0xff]
        %v1339 = vld [vmem:[#allocation2 + $0x8] sm:$0xff]
        %v1340 = vld [vmem:[#allocation2 + $0x10] sm:$0xff]
        %v1341 = vld [vmem:[#allocation2 + $0x18] sm:$0xff]
        %v1342 = vld [vmem:[#allocation2 + $0x20] sm:$0xff]
        %v1343 = vld [vmem:[#allocation2 + $0x28] sm:$0xff]
        %v1344 = vld [vmem:[#allocation2 + $0x30] sm:$0xff]
        %v1345 = vld [vmem:[#allocation2 + $0x38] sm:$0xff]
        %v1346 = vld [vmem:[#allocation2 + $0x40] sm:$0xff]
        %v1347 = vld [vmem:[#allocation2 + $0x48] sm:$0xff]
        %v1348 = vld [vmem:[#allocation2 + $0x50] sm:$0xff]
        %v1349 = vld [vmem:[#allocation2 + $0x58] sm:$0xff]
        %v1350 = vld [vmem:[#allocation2 + $0x60] sm:$0xff]
        %v1351 = vld [vmem:[#allocation2 + $0x68] sm:$0xff]
        %v1352 = vld [vmem:[#allocation2 + $0x70] sm:$0xff]
        %v1353 = vld [vmem:[#allocation2 + $0x78] sm:$0xff]
        %v1354 = vld [vmem:[#allocation8] sm:$0x1]
        %v1355 = vld [vmem:[#allocation9] sm:$0x1]
        %1356 = vadd.xlane.f32.xlu0 %v1338
        %v1357 = vpop.xlane.xlu0 %1356
        %1358 = vadd.xlane.f32.xlu0 %v1339
        %v1359 = vpop.xlane.xlu0 %1358
        %1360 = vadd.xlane.f32.xlu0 %v1340
        %v1361 = vpop.xlane.xlu0 %1360
        %1362 = vadd.xlane.f32.xlu0 %v1341
        %v1363 = vpop.xlane.xlu0 %1362
        %1364 = vadd.xlane.f32.xlu0 %v1342
        %v1365 = vpop.xlane.xlu0 %1364
        %1366 = vadd.xlane.f32.xlu0 %v1343
        %v1367 = vpop.xlane.xlu0 %1366
        %1368 = vadd.xlane.f32.xlu0 %v1344
        %v1369 = vpop.xlane.xlu0 %1368
        %1370 = vadd.xlane.f32.xlu0 %v1345
        %v1371 = vpop.xlane.xlu0 %1370
        %1372 = vadd.xlane.f32.xlu0 %v1346
        %v1373 = vpop.xlane.xlu0 %1372
        %1374 = vadd.xlane.f32.xlu0 %v1347
        %v1375 = vpop.xlane.xlu0 %1374
        %1376 = vadd.xlane.f32.xlu0 %v1348
        %v1377 = vpop.xlane.xlu0 %1376
        %1378 = vadd.xlane.f32.xlu0 %v1349
        %v1379 = vpop.xlane.xlu0 %1378
        %1380 = vadd.xlane.f32.xlu0 %v1350
        %v1381 = vpop.xlane.xlu0 %1380
        %1382 = vadd.xlane.f32.xlu0 %v1351
        %v1383 = vpop.xlane.xlu0 %1382
        %1384 = vadd.xlane.f32.xlu0 %v1352
        %v1385 = vpop.xlane.xlu0 %1384
        %1386 = vadd.xlane.f32.xlu0 %v1353
        %v1387 = vpop.xlane.xlu0 %1386
        %v1388 = vmul.f32 %v1357, %v567
        %v1389 = vmul.f32 %v1359, %v567
        %v1390 = vmul.f32 %v1361, %v567
        %v1391 = vmul.f32 %v1363, %v567
        %v1392 = vmul.f32 %v1365, %v567
        %v1393 = vmul.f32 %v1367, %v567
        %v1394 = vmul.f32 %v1369, %v567
        %v1395 = vmul.f32 %v1371, %v567
        %v1396 = vmul.f32 %v1373, %v567
        %v1397 = vmul.f32 %v1375, %v567
        %v1398 = vmul.f32 %v1377, %v567
        %v1399 = vmul.f32 %v1379, %v567
        %v1400 = vmul.f32 %v1381, %v567
        %v1401 = vmul.f32 %v1383, %v567
        %v1402 = vmul.f32 %v1385, %v567
        %v1403 = vmul.f32 %v1387, %v567
        %v1404 = vsub.f32 %v1338, %v1388
        %v1405 = vsub.f32 %v1339, %v1389
        %v1406 = vsub.f32 %v1340, %v1390
        %v1407 = vsub.f32 %v1341, %v1391
        %v1408 = vsub.f32 %v1342, %v1392
        %v1409 = vsub.f32 %v1343, %v1393
        %v1410 = vsub.f32 %v1344, %v1394
        %v1411 = vsub.f32 %v1345, %v1395
        %v1412 = vsub.f32 %v1346, %v1396
        %v1413 = vsub.f32 %v1347, %v1397
        %v1414 = vsub.f32 %v1348, %v1398
        %v1415 = vsub.f32 %v1349, %v1399
        %v1416 = vsub.f32 %v1350, %v1400
        %v1417 = vsub.f32 %v1351, %v1401
        %v1418 = vsub.f32 %v1352, %v1402
        %v1419 = vsub.f32 %v1353, %v1403
        %v1420 = vmul.f32 %v1404, %v1404
        %v1421 = vmul.f32 %v1405, %v1405
        %v1422 = vmul.f32 %v1406, %v1406
        %v1423 = vmul.f32 %v1407, %v1407
        %v1424 = vmul.f32 %v1408, %v1408
        %v1425 = vmul.f32 %v1409, %v1409
        %v1426 = vmul.f32 %v1410, %v1410
        %v1427 = vmul.f32 %v1411, %v1411
        %v1428 = vmul.f32 %v1412, %v1412
        %v1429 = vmul.f32 %v1413, %v1413
        %v1430 = vmul.f32 %v1414, %v1414
        %v1431 = vmul.f32 %v1415, %v1415
        %v1432 = vmul.f32 %v1416, %v1416
        %v1433 = vmul.f32 %v1417, %v1417
        %v1434 = vmul.f32 %v1418, %v1418
        %v1435 = vmul.f32 %v1419, %v1419
        %1436 = vadd.xlane.f32.xlu0 %v1420
        %v1437 = vpop.xlane.xlu0 %1436
        %1438 = vadd.xlane.f32.xlu0 %v1421
        %v1439 = vpop.xlane.xlu0 %1438
        %1440 = vadd.xlane.f32.xlu0 %v1422
        %v1441 = vpop.xlane.xlu0 %1440
        %1442 = vadd.xlane.f32.xlu0 %v1423
        %v1443 = vpop.xlane.xlu0 %1442
        %1444 = vadd.xlane.f32.xlu0 %v1424
        %v1445 = vpop.xlane.xlu0 %1444
        %1446 = vadd.xlane.f32.xlu0 %v1425
        %v1447 = vpop.xlane.xlu0 %1446
        %1448 = vadd.xlane.f32.xlu0 %v1426
        %v1449 = vpop.xlane.xlu0 %1448
        %1450 = vadd.xlane.f32.xlu0 %v1427
        %v1451 = vpop.xlane.xlu0 %1450
        %1452 = vadd.xlane.f32.xlu0 %v1428
        %v1453 = vpop.xlane.xlu0 %1452
        %1454 = vadd.xlane.f32.xlu0 %v1429
        %v1455 = vpop.xlane.xlu0 %1454
        %1456 = vadd.xlane.f32.xlu0 %v1430
        %v1457 = vpop.xlane.xlu0 %1456
        %1458 = vadd.xlane.f32.xlu0 %v1431
        %v1459 = vpop.xlane.xlu0 %1458
        %1460 = vadd.xlane.f32.xlu0 %v1432
        %v1461 = vpop.xlane.xlu0 %1460
        %1462 = vadd.xlane.f32.xlu0 %v1433
        %v1463 = vpop.xlane.xlu0 %1462
        %1464 = vadd.xlane.f32.xlu0 %v1434
        %v1465 = vpop.xlane.xlu0 %1464
        %1466 = vadd.xlane.f32.xlu0 %v1435
        %v1467 = vpop.xlane.xlu0 %1466
        %v1468 = vmul.f32 %v1437, %v567
        %v1469 = vmul.f32 %v1439, %v567
        %v1470 = vmul.f32 %v1441, %v567
        %v1471 = vmul.f32 %v1443, %v567
        %v1472 = vmul.f32 %v1445, %v567
        %v1473 = vmul.f32 %v1447, %v567
        %v1474 = vmul.f32 %v1449, %v567
        %v1475 = vmul.f32 %v1451, %v567
        %v1476 = vmul.f32 %v1453, %v567
        %v1477 = vmul.f32 %v1455, %v567
        %v1478 = vmul.f32 %v1457, %v567
        %v1479 = vmul.f32 %v1459, %v567
        %v1480 = vmul.f32 %v1461, %v567
        %v1481 = vmul.f32 %v1463, %v567
        %v1482 = vmul.f32 %v1465, %v567
        %v1483 = vmul.f32 %v1467, %v567
        %v1484 = vadd.f32 %v1468, 1e-05
        %v1485 = vadd.f32 %v1469, 1e-05
        %v1486 = vadd.f32 %v1470, 1e-05
        %v1487 = vadd.f32 %v1471, 1e-05
        %v1488 = vadd.f32 %v1472, 1e-05
        %v1489 = vadd.f32 %v1473, 1e-05
        %v1490 = vadd.f32 %v1474, 1e-05
        %v1491 = vadd.f32 %v1475, 1e-05
        %v1492 = vadd.f32 %v1476, 1e-05
        %v1493 = vadd.f32 %v1477, 1e-05
        %v1494 = vadd.f32 %v1478, 1e-05
        %v1495 = vadd.f32 %v1479, 1e-05
        %v1496 = vadd.f32 %v1480, 1e-05
        %v1497 = vadd.f32 %v1481, 1e-05
        %v1498 = vadd.f32 %v1482, 1e-05
        %v1499 = vadd.f32 %v1483, 1e-05
        %v1500 = vrsqrt.pop %v1484
        %v1501 = vrsqrt.pop %v1485
        %v1502 = vrsqrt.pop %v1486
        %v1503 = vrsqrt.pop %v1487
        %v1504 = vrsqrt.pop %v1488
        %v1505 = vrsqrt.pop %v1489
        %v1506 = vrsqrt.pop %v1490
        %v1507 = vrsqrt.pop %v1491
        %v1508 = vrsqrt.pop %v1492
        %v1509 = vrsqrt.pop %v1493
        %v1510 = vrsqrt.pop %v1494
        %v1511 = vrsqrt.pop %v1495
        %v1512 = vrsqrt.pop %v1496
        %v1513 = vrsqrt.pop %v1497
        %v1514 = vrsqrt.pop %v1498
        %v1515 = vrsqrt.pop %v1499
        %v1516 = vmul.f32 %v1404, %v1500
        %v1517 = vmul.f32 %v1405, %v1501
        %v1518 = vmul.f32 %v1406, %v1502
        %v1519 = vmul.f32 %v1407, %v1503
        %v1520 = vmul.f32 %v1408, %v1504
        %v1521 = vmul.f32 %v1409, %v1505
        %v1522 = vmul.f32 %v1410, %v1506
        %v1523 = vmul.f32 %v1411, %v1507
        %v1524 = vmul.f32 %v1412, %v1508
        %v1525 = vmul.f32 %v1413, %v1509
        %v1526 = vmul.f32 %v1414, %v1510
        %v1527 = vmul.f32 %v1415, %v1511
        %v1528 = vmul.f32 %v1416, %v1512
        %v1529 = vmul.f32 %v1417, %v1513
        %v1530 = vmul.f32 %v1418, %v1514
        %v1531 = vmul.f32 %v1419, %v1515
        %v1533 = vlaneseq
        %v1534 = vshrl.u32 %v1533, 7
        %v1535 = vsub.s32 0, %v1534
        %v1536 = vrot.slane %v1354, %v1535
        %v1538 = vmul.f32 %v1516, %v1536
        %v1539 = vmul.f32 %v1517, %v1536
        %v1540 = vmul.f32 %v1518, %v1536
        %v1541 = vmul.f32 %v1519, %v1536
        %v1542 = vmul.f32 %v1520, %v1536
        %v1543 = vmul.f32 %v1521, %v1536
        %v1544 = vmul.f32 %v1522, %v1536
        %v1545 = vmul.f32 %v1523, %v1536
        %v1546 = vmul.f32 %v1524, %v1536
        %v1547 = vmul.f32 %v1525, %v1536
        %v1548 = vmul.f32 %v1526, %v1536
        %v1549 = vmul.f32 %v1527, %v1536
        %v1550 = vmul.f32 %v1528, %v1536
        %v1551 = vmul.f32 %v1529, %v1536
        %v1552 = vmul.f32 %v1530, %v1536
        %v1553 = vmul.f32 %v1531, %v1536
        %v1555 = vlaneseq
        %v1556 = vshrl.u32 %v1555, 7
        %v1557 = vsub.s32 0, %v1556
        %v1558 = vrot.slane %v1355, %v1557
        %v1560 = vadd.f32 %v1538, %v1558
        %v1561 = vadd.f32 %v1539, %v1558
        %v1562 = vadd.f32 %v1540, %v1558
        %v1563 = vadd.f32 %v1541, %v1558
        %v1564 = vadd.f32 %v1542, %v1558
        %v1565 = vadd.f32 %v1543, %v1558
        %v1566 = vadd.f32 %v1544, %v1558
        %v1567 = vadd.f32 %v1545, %v1558
        %v1568 = vadd.f32 %v1546, %v1558
        %v1569 = vadd.f32 %v1547, %v1558
        %v1570 = vadd.f32 %v1548, %v1558
        %v1571 = vadd.f32 %v1549, %v1558
        %v1572 = vadd.f32 %v1550, %v1558
        %v1573 = vadd.f32 %v1551, %v1558
        %v1574 = vadd.f32 %v1552, %v1558
        %v1575 = vadd.f32 %v1553, %v1558
        %v1576 = vpack.c.bf16 %v1561, %v1560
        %v1577 = vpack.c.bf16 %v1563, %v1562
        %v1578 = vpack.c.bf16 %v1565, %v1564
        %v1579 = vpack.c.bf16 %v1567, %v1566
        %v1580 = vpack.c.bf16 %v1569, %v1568
        %v1581 = vpack.c.bf16 %v1571, %v1570
        %v1582 = vpack.c.bf16 %v1573, %v1572
        %v1583 = vpack.c.bf16 %v1575, %v1574
        %v1584 = vld [vmem:[%s9] sm:$0xff]
        %v1585 = vld [vmem:[%s9 + $0x8] sm:$0xff]
        %v1586 = vld [vmem:[%s9 + $0x10] sm:$0xff]
        %v1587 = vld [vmem:[%s9 + $0x18] sm:$0xff]
        %v1588 = vld [vmem:[%s9 + $0x20] sm:$0xff]
        %v1589 = vld [vmem:[%s9 + $0x28] sm:$0xff]
        %v1590 = vld [vmem:[%s9 + $0x30] sm:$0xff]
        %v1591 = vld [vmem:[%s9 + $0x38] sm:$0xff]
        %v1592 = vld [vmem:[%s9 + $0x40] sm:$0xff]
        %v1593 = vld [vmem:[%s9 + $0x48] sm:$0xff]
        %v1594 = vld [vmem:[%s9 + $0x50] sm:$0xff]
        %v1595 = vld [vmem:[%s9 + $0x58] sm:$0xff]
        %v1596 = vld [vmem:[%s9 + $0x60] sm:$0xff]
        %v1597 = vld [vmem:[%s9 + $0x68] sm:$0xff]
        %v1598 = vld [vmem:[%s9 + $0x70] sm:$0xff]
        %v1599 = vld [vmem:[%s9 + $0x78] sm:$0xff]
        %v1600 = vld [vmem:[%s10] sm:$0x3]
        %v1602 = vlaneseq
        %v1603 = vshrl.u32 %v1602, 7
        %v1604 = vsub.s32 0, %v1603
        %v1605 = vrot.slane %v1600, %v1604
        %v1606 = vlaneseq
        %v1607 = vshrl.u32 %v1606, 7
        %v1608 = vsub.s32 1, %v1607
        %v1609 = vrot.slane %v1600, %v1608
        %v1628 = vunpack.c.l.b16 %v1584
        %v1629 = vunpack.c.h.b16 %v1584
        %v1630 = vunpack.c.l.b16 %v1585
        %v1631 = vunpack.c.h.b16 %v1585
        %v1632 = vunpack.c.l.b16 %v1586
        %v1633 = vunpack.c.h.b16 %v1586
        %v1634 = vunpack.c.l.b16 %v1587
        %v1635 = vunpack.c.h.b16 %v1587
        %v1636 = vunpack.c.l.b16 %v1588
        %v1637 = vunpack.c.h.b16 %v1588
        %v1638 = vunpack.c.l.b16 %v1589
        %v1639 = vunpack.c.h.b16 %v1589
        %v1640 = vunpack.c.l.b16 %v1590
        %v1641 = vunpack.c.h.b16 %v1590
        %v1642 = vunpack.c.l.b16 %v1591
        %v1643 = vunpack.c.h.b16 %v1591
        %v1644 = vunpack.c.l.b16 %v1592
        %v1645 = vunpack.c.h.b16 %v1592
        %v1646 = vunpack.c.l.b16 %v1593
        %v1647 = vunpack.c.h.b16 %v1593
        %v1648 = vunpack.c.l.b16 %v1594
        %v1649 = vunpack.c.h.b16 %v1594
        %v1650 = vunpack.c.l.b16 %v1595
        %v1651 = vunpack.c.h.b16 %v1595
        %v1652 = vunpack.c.l.b16 %v1596
        %v1653 = vunpack.c.h.b16 %v1596
        %v1654 = vunpack.c.l.b16 %v1597
        %v1655 = vunpack.c.h.b16 %v1597
        %v1656 = vunpack.c.l.b16 %v1598
        %v1657 = vunpack.c.h.b16 %v1598
        %v1658 = vunpack.c.l.b16 %v1599
        %v1659 = vunpack.c.h.b16 %v1599
        %v1660 = vpack.c.b16 %v1630, %v1628
        %v1661 = vpack.c.b16 %v1631, %v1629
        %v1662 = vpack.c.b16 %v1634, %v1632
        %v1663 = vpack.c.b16 %v1635, %v1633
        %v1664 = vpack.c.b16 %v1638, %v1636
        %v1665 = vpack.c.b16 %v1639, %v1637
        %v1666 = vpack.c.b16 %v1642, %v1640
        %v1667 = vpack.c.b16 %v1643, %v1641
        %v1668 = vpack.c.b16 %v1646, %v1644
        %v1669 = vpack.c.b16 %v1647, %v1645
        %v1670 = vpack.c.b16 %v1650, %v1648
        %v1671 = vpack.c.b16 %v1651, %v1649
        %v1672 = vpack.c.b16 %v1654, %v1652
        %v1673 = vpack.c.b16 %v1655, %v1653
        %v1674 = vpack.c.b16 %v1658, %v1656
        %v1675 = vpack.c.b16 %v1659, %v1657
        %1692 = vmatprep.subr.bf16.mxu0 %v1661
        %1693 = vmatpush1.bf16.msra.mxu0 %v1660
        %1694 = vmatprep.subr.bf16.mxu0 %v1663
        %1695 = vmatpush1.bf16.msra.mxu0 %v1662
        %1696 = vmatprep.subr.bf16.mxu0 %v1665
        %1697 = vmatpush1.bf16.msra.mxu0 %v1664
        %1698 = vmatprep.subr.bf16.mxu0 %v1667
        %1699 = vmatpush1.bf16.msra.mxu0 %v1666
        %1700 = vmatprep.subr.bf16.mxu0 %v1669
        %1701 = vmatpush1.bf16.msra.mxu0 %v1668
        %1702 = vmatprep.subr.bf16.mxu0 %v1671
        %1703 = vmatpush1.bf16.msra.mxu0 %v1670
        %1704 = vmatprep.subr.bf16.mxu0 %v1673
        %1705 = vmatpush1.bf16.msra.mxu0 %v1672
        %1706 = vmatprep.subr.bf16.mxu0 %v1675
        %1707 = vmatpush1.bf16.msra.mxu0 %v1674
        %1708 = vmatprep.subr.bf16.mxu0 0
        %1709 = vmatpush1.bf16.msra.mxu0 0
        %1710 = vmatprep.subr.bf16.mxu0 0
        %1711 = vmatpush1.bf16.msra.mxu0 0
        %1712 = vmatprep.subr.bf16.mxu0 0
        %1713 = vmatpush1.bf16.msra.mxu0 0
        %1714 = vmatprep.subr.bf16.mxu0 0
        %1715 = vmatpush1.bf16.msra.mxu0 0
        %1716 = vmatprep.subr.bf16.mxu0 0
        %1717 = vmatpush1.bf16.msra.mxu0 0
        %1718 = vmatprep.subr.bf16.mxu0 0
        %1719 = vmatpush1.bf16.msra.mxu0 0
        %1720 = vmatprep.subr.bf16.mxu0 0
        %1721 = vmatpush1.bf16.msra.mxu0 0
        %1722 = vmatprep.subr.bf16.mxu0 0
        %1723 = vmatpush1.bf16.msra.mxu0 0
        %1724 = vmatprep.mubr.bf16.mxu0 0
        %1725 = vmatmul.mubr.bf16.gmra.mrb[0].mxu0 %v1576
        %v1726 = vpop.f32.mrb[0].mxu0
        %v1727 = vadd.f32 %v1605, %v1726
        %v1728 = vpop.f32.mrb[0].mxu0
        %v1729 = vadd.f32 %v1609, %v1728
        %v1730 = vpop.f32.mrb[0].mxu0
        %v1731 = vadd.f32 %v1605, %v1730
        %v1732 = vpop.f32.mrb[0].mxu0
        %v1733 = vadd.f32 %v1609, %v1732
        %1734 = vmatprep.mubr.bf16.mxu0 0
        %1735 = vmatmul.mubr.bf16.gmra.mrb[0].mxu0 %v1577
        %v1736 = vpop.f32.mrb[0].mxu0
        %v1737 = vadd.f32 %v1605, %v1736
        %v1738 = vpop.f32.mrb[0].mxu0
        %v1739 = vadd.f32 %v1609, %v1738
        %v1740 = vpop.f32.mrb[0].mxu0
        %v1741 = vadd.f32 %v1605, %v1740
        %v1742 = vpop.f32.mrb[0].mxu0
        %v1743 = vadd.f32 %v1609, %v1742
        %1744 = vmatprep.mubr.bf16.mxu0 0
        %1745 = vmatmul.mubr.bf16.gmra.mrb[0].mxu0 %v1578
        %v1746 = vpop.f32.mrb[0].mxu0
        %v1747 = vadd.f32 %v1605, %v1746
        %v1748 = vpop.f32.mrb[0].mxu0
        %v1749 = vadd.f32 %v1609, %v1748
        %v1750 = vpop.f32.mrb[0].mxu0
        %v1751 = vadd.f32 %v1605, %v1750
        %v1752 = vpop.f32.mrb[0].mxu0
        %v1753 = vadd.f32 %v1609, %v1752
        %1754 = vmatprep.mubr.bf16.mxu0 0
        %1755 = vmatmul.mubr.bf16.gmra.mrb[0].mxu0 %v1579
        %v1756 = vpop.f32.mrb[0].mxu0
        %v1757 = vadd.f32 %v1605, %v1756
        %v1758 = vpop.f32.mrb[0].mxu0
        %v1759 = vadd.f32 %v1609, %v1758
        %v1760 = vpop.f32.mrb[0].mxu0
        %v1761 = vadd.f32 %v1605, %v1760
        %v1762 = vpop.f32.mrb[0].mxu0
        %v1763 = vadd.f32 %v1609, %v1762
        %1764 = vmatprep.mubr.bf16.mxu0 0
        %1765 = vmatmul.mubr.bf16.gmra.mrb[0].mxu0 %v1580
        %v1766 = vpop.f32.mrb[0].mxu0
        %v1767 = vadd.f32 %v1605, %v1766
        %v1768 = vpop.f32.mrb[0].mxu0
        %v1769 = vadd.f32 %v1609, %v1768
        %v1770 = vpop.f32.mrb[0].mxu0
        %v1771 = vadd.f32 %v1605, %v1770
        %v1772 = vpop.f32.mrb[0].mxu0
        %v1773 = vadd.f32 %v1609, %v1772
        %1774 = vmatprep.mubr.bf16.mxu0 0
        %1775 = vmatmul.mubr.bf16.gmra.mrb[0].mxu0 %v1581
        %v1776 = vpop.f32.mrb[0].mxu0
        %v1777 = vadd.f32 %v1605, %v1776
        %v1778 = vpop.f32.mrb[0].mxu0
        %v1779 = vadd.f32 %v1609, %v1778
        %v1780 = vpop.f32.mrb[0].mxu0
        %v1781 = vadd.f32 %v1605, %v1780
        %v1782 = vpop.f32.mrb[0].mxu0
        %v1783 = vadd.f32 %v1609, %v1782
        %1784 = vmatprep.mubr.bf16.mxu0 0
        %1785 = vmatmul.mubr.bf16.gmra.mrb[0].mxu0 %v1582
        %v1786 = vpop.f32.mrb[0].mxu0
        %v1787 = vadd.f32 %v1605, %v1786
        %v1788 = vpop.f32.mrb[0].mxu0
        %v1789 = vadd.f32 %v1609, %v1788
        %v1790 = vpop.f32.mrb[0].mxu0
        %v1791 = vadd.f32 %v1605, %v1790
        %v1792 = vpop.f32.mrb[0].mxu0
        %v1793 = vadd.f32 %v1609, %v1792
        %1794 = vmatprep.mubr.bf16.mxu0 0
        %1795 = vmatmul.mubr.bf16.gmra.mrb[0].mxu0 %v1583
        %v1796 = vpop.f32.mrb[0].mxu0
        %v1797 = vadd.f32 %v1605, %v1796
        %v1798 = vpop.f32.mrb[0].mxu0
        %v1799 = vadd.f32 %v1609, %v1798
        %v1800 = vpop.f32.mrb[0].mxu0
        %v1801 = vadd.f32 %v1605, %v1800
        %v1802 = vpop.f32.mrb[0].mxu0
        %v1803 = vadd.f32 %v1609, %v1802
        %1804 = vdwg.mxu0
        %v1805 = vmax.f32 %v1727, 0.0
        %v1806 = vmax.f32 %v1729, 0.0
        %v1807 = vmax.f32 %v1731, 0.0
        %v1808 = vmax.f32 %v1733, 0.0
        %v1809 = vmax.f32 %v1737, 0.0
        %v1810 = vmax.f32 %v1739, 0.0
        %v1811 = vmax.f32 %v1741, 0.0
        %v1812 = vmax.f32 %v1743, 0.0
        %v1813 = vmax.f32 %v1747, 0.0
        %v1814 = vmax.f32 %v1749, 0.0
        %v1815 = vmax.f32 %v1751, 0.0
        %v1816 = vmax.f32 %v1753, 0.0
        %v1817 = vmax.f32 %v1757, 0.0
        %v1818 = vmax.f32 %v1759, 0.0
        %v1819 = vmax.f32 %v1761, 0.0
        %v1820 = vmax.f32 %v1763, 0.0
        %v1821 = vmax.f32 %v1767, 0.0
        %v1822 = vmax.f32 %v1769, 0.0
        %v1823 = vmax.f32 %v1771, 0.0
        %v1824 = vmax.f32 %v1773, 0.0
        %v1825 = vmax.f32 %v1777, 0.0
        %v1826 = vmax.f32 %v1779, 0.0
        %v1827 = vmax.f32 %v1781, 0.0
        %v1828 = vmax.f32 %v1783, 0.0
        %v1829 = vmax.f32 %v1787, 0.0
        %v1830 = vmax.f32 %v1789, 0.0
        %v1831 = vmax.f32 %v1791, 0.0
        %v1832 = vmax.f32 %v1793, 0.0
        %v1833 = vmax.f32 %v1797, 0.0
        %v1834 = vmax.f32 %v1799, 0.0
        %v1835 = vmax.f32 %v1801, 0.0
        %v1836 = vmax.f32 %v1803, 0.0
        %v1837 = vpack.c.bf16 %v1807, %v1805
        %v1838 = vpack.c.bf16 %v1808, %v1806
        %v1839 = vpack.c.bf16 %v1811, %v1809
        %v1840 = vpack.c.bf16 %v1812, %v1810
        %v1841 = vpack.c.bf16 %v1815, %v1813
        %v1842 = vpack.c.bf16 %v1816, %v1814
        %v1843 = vpack.c.bf16 %v1819, %v1817
        %v1844 = vpack.c.bf16 %v1820, %v1818
        %v1845 = vpack.c.bf16 %v1823, %v1821
        %v1846 = vpack.c.bf16 %v1824, %v1822
        %v1847 = vpack.c.bf16 %v1827, %v1825
        %v1848 = vpack.c.bf16 %v1828, %v1826
        %v1849 = vpack.c.bf16 %v1831, %v1829
        %v1850 = vpack.c.bf16 %v1832, %v1830
        %v1851 = vpack.c.bf16 %v1835, %v1833
        %v1852 = vpack.c.bf16 %v1836, %v1834
        %v1853 = vld [vmem:[#allocation11] sm:$0xf]
        %v1854 = vld [vmem:[#allocation11 + $0x4] sm:$0xf]
        %v1855 = vld [vmem:[#allocation11 + $0x8] sm:$0xf]
        %v1856 = vld [vmem:[#allocation11 + $0xc] sm:$0xf]
        %v1857 = vld [vmem:[#allocation11 + $0x10] sm:$0xf]
        %v1858 = vld [vmem:[#allocation11 + $0x14] sm:$0xf]
        %v1859 = vld [vmem:[#allocation11 + $0x18] sm:$0xf]
        %v1860 = vld [vmem:[#allocation11 + $0x1c] sm:$0xf]
        %v1861 = vld [vmem:[#allocation11 + $0x20] sm:$0xf]
        %v1862 = vld [vmem:[#allocation11 + $0x24] sm:$0xf]
        %v1863 = vld [vmem:[#allocation11 + $0x28] sm:$0xf]
        %v1864 = vld [vmem:[#allocation11 + $0x2c] sm:$0xf]
        %v1865 = vld [vmem:[#allocation11 + $0x30] sm:$0xf]
        %v1866 = vld [vmem:[#allocation11 + $0x34] sm:$0xf]
        %v1867 = vld [vmem:[#allocation11 + $0x38] sm:$0xf]
        %v1868 = vld [vmem:[#allocation11 + $0x3c] sm:$0xf]
        %v1869 = vld [vmem:[#allocation11 + $0x40] sm:$0xf]
        %v1870 = vld [vmem:[#allocation11 + $0x44] sm:$0xf]
        %v1871 = vld [vmem:[#allocation11 + $0x48] sm:$0xf]
        %v1872 = vld [vmem:[#allocation11 + $0x4c] sm:$0xf]
        %v1873 = vld [vmem:[#allocation11 + $0x50] sm:$0xf]
        %v1874 = vld [vmem:[#allocation11 + $0x54] sm:$0xf]
        %v1875 = vld [vmem:[#allocation11 + $0x58] sm:$0xf]
        %v1876 = vld [vmem:[#allocation11 + $0x5c] sm:$0xf]
        %v1877 = vld [vmem:[#allocation11 + $0x60] sm:$0xf]
        %v1878 = vld [vmem:[#allocation11 + $0x64] sm:$0xf]
        %v1879 = vld [vmem:[#allocation11 + $0x68] sm:$0xf]
        %v1880 = vld [vmem:[#allocation11 + $0x6c] sm:$0xf]
        %v1881 = vld [vmem:[#allocation11 + $0x70] sm:$0xf]
        %v1882 = vld [vmem:[#allocation11 + $0x74] sm:$0xf]
        %v1883 = vld [vmem:[#allocation11 + $0x78] sm:$0xf]
        %v1884 = vld [vmem:[#allocation11 + $0x7c] sm:$0xf]
        %v1885 = vld [vmem:[%s12] sm:$0x1]
        %v1887 = vlaneseq
        %v1888 = vshrl.u32 %v1887, 7
        %v1889 = vsub.s32 0, %v1888
        %v1890 = vrot.slane %v1885, %v1889
        %v1924 = vunpack.c.l.b16 %v1853
        %v1925 = vunpack.c.l.b16 %v1854
        %v1926 = vunpack.c.l.b16 %v1855
        %v1927 = vunpack.c.l.b16 %v1856
        %v1928 = vunpack.c.l.b16 %v1857
        %v1929 = vunpack.c.l.b16 %v1858
        %v1930 = vunpack.c.l.b16 %v1859
        %v1931 = vunpack.c.l.b16 %v1860
        %v1932 = vunpack.c.l.b16 %v1861
        %v1933 = vunpack.c.l.b16 %v1862
        %v1934 = vunpack.c.l.b16 %v1863
        %v1935 = vunpack.c.l.b16 %v1864
        %v1936 = vunpack.c.l.b16 %v1865
        %v1937 = vunpack.c.l.b16 %v1866
        %v1938 = vunpack.c.l.b16 %v1867
        %v1939 = vunpack.c.l.b16 %v1868
        %v1940 = vunpack.c.l.b16 %v1869
        %v1941 = vunpack.c.l.b16 %v1870
        %v1942 = vunpack.c.l.b16 %v1871
        %v1943 = vunpack.c.l.b16 %v1872
        %v1944 = vunpack.c.l.b16 %v1873
        %v1945 = vunpack.c.l.b16 %v1874
        %v1946 = vunpack.c.l.b16 %v1875
        %v1947 = vunpack.c.l.b16 %v1876
        %v1948 = vunpack.c.l.b16 %v1877
        %v1949 = vunpack.c.l.b16 %v1878
        %v1950 = vunpack.c.l.b16 %v1879
        %v1951 = vunpack.c.l.b16 %v1880
        %v1952 = vunpack.c.l.b16 %v1881
        %v1953 = vunpack.c.l.b16 %v1882
        %v1954 = vunpack.c.l.b16 %v1883
        %v1955 = vunpack.c.l.b16 %v1884
        %v1956 = vpack.c.b16 %v1925, %v1924
        %v1957 = vpack.c.b16 %v1927, %v1926
        %v1958 = vpack.c.b16 %v1929, %v1928
        %v1959 = vpack.c.b16 %v1931, %v1930
        %v1960 = vpack.c.b16 %v1933, %v1932
        %v1961 = vpack.c.b16 %v1935, %v1934
        %v1962 = vpack.c.b16 %v1937, %v1936
        %v1963 = vpack.c.b16 %v1939, %v1938
        %v1964 = vpack.c.b16 %v1941, %v1940
        %v1965 = vpack.c.b16 %v1943, %v1942
        %v1966 = vpack.c.b16 %v1945, %v1944
        %v1967 = vpack.c.b16 %v1947, %v1946
        %v1968 = vpack.c.b16 %v1949, %v1948
        %v1969 = vpack.c.b16 %v1951, %v1950
        %v1970 = vpack.c.b16 %v1953, %v1952
        %v1971 = vpack.c.b16 %v1955, %v1954
        %1988 = vmatprep.subr.bf16.mxu0 0
        %1989 = vmatpush1.bf16.msra.mxu0 %v1956
        %1990 = vmatprep.subr.bf16.mxu0 0
        %1991 = vmatpush1.bf16.msra.mxu0 %v1957
        %1992 = vmatprep.subr.bf16.mxu0 0
        %1993 = vmatpush1.bf16.msra.mxu0 %v1958
        %1994 = vmatprep.subr.bf16.mxu0 0
        %1995 = vmatpush1.bf16.msra.mxu0 %v1959
        %1996 = vmatprep.subr.bf16.mxu0 0
        %1997 = vmatpush1.bf16.msra.mxu0 %v1960
        %1998 = vmatprep.subr.bf16.mxu0 0
        %1999 = vmatpush1.bf16.msra.mxu0 %v1961
        %2000 = vmatprep.subr.bf16.mxu0 0
        %2001 = vmatpush1.bf16.msra.mxu0 %v1962
        %2002 = vmatprep.subr.bf16.mxu0 0
        %2003 = vmatpush1.bf16.msra.mxu0 %v1963
        %2004 = vmatprep.subr.bf16.mxu0 0
        %2005 = vmatpush1.bf16.msra.mxu0 %v1964
        %2006 = vmatprep.subr.bf16.mxu0 0
        %2007 = vmatpush1.bf16.msra.mxu0 %v1965
        %2008 = vmatprep.subr.bf16.mxu0 0
        %2009 = vmatpush1.bf16.msra.mxu0 %v1966
        %2010 = vmatprep.subr.bf16.mxu0 0
        %2011 = vmatpush1.bf16.msra.mxu0 %v1967
        %2012 = vmatprep.subr.bf16.mxu0 0
        %2013 = vmatpush1.bf16.msra.mxu0 %v1968
        %2014 = vmatprep.subr.bf16.mxu0 0
        %2015 = vmatpush1.bf16.msra.mxu0 %v1969
        %2016 = vmatprep.subr.bf16.mxu0 0
        %2017 = vmatpush1.bf16.msra.mxu0 %v1970
        %2018 = vmatprep.subr.bf16.mxu0 0
        %2019 = vmatpush1.bf16.msra.mxu0 %v1971
        %2020 = vmatprep.mubr.bf16.mxu0 %v1838
        %2021 = vmatmul.mubr.bf16.gmra.mrb[0].mxu0 %v1837
        %v2022 = vpop.f32.mrb[0].mxu0
        %v2023 = vadd.f32 %v1890, %v2022
        %v2024 = vpop.f32.mrb[0].mxu0
        %v2025 = vpop.f32.mrb[0].mxu0
        %v2026 = vadd.f32 %v1890, %v2025
        %v2027 = vpop.f32.mrb[0].mxu0
        %2028 = vmatprep.mubr.bf16.mxu0 %v1840
        %2029 = vmatmul.mubr.bf16.gmra.mrb[0].mxu0 %v1839
        %v2030 = vpop.f32.mrb[0].mxu0
        %v2031 = vadd.f32 %v1890, %v2030
        %v2032 = vpop.f32.mrb[0].mxu0
        %v2033 = vpop.f32.mrb[0].mxu0
        %v2034 = vadd.f32 %v1890, %v2033
        %v2035 = vpop.f32.mrb[0].mxu0
        %2036 = vmatprep.mubr.bf16.mxu0 %v1842
        %2037 = vmatmul.mubr.bf16.gmra.mrb[0].mxu0 %v1841
        %v2038 = vpop.f32.mrb[0].mxu0
        %v2039 = vadd.f32 %v1890, %v2038
        %v2040 = vpop.f32.mrb[0].mxu0
        %v2041 = vpop.f32.mrb[0].mxu0
        %v2042 = vadd.f32 %v1890, %v2041
        %v2043 = vpop.f32.mrb[0].mxu0
        %2044 = vmatprep.mubr.bf16.mxu0 %v1844
        %2045 = vmatmul.mubr.bf16.gmra.mrb[0].mxu0 %v1843
        %v2046 = vpop.f32.mrb[0].mxu0
        %v2047 = vadd.f32 %v1890, %v2046
        %v2048 = vpop.f32.mrb[0].mxu0
        %v2049 = vpop.f32.mrb[0].mxu0
        %v2050 = vadd.f32 %v1890, %v2049
        %v2051 = vpop.f32.mrb[0].mxu0
        %2052 = vmatprep.mubr.bf16.mxu0 %v1846
        %2053 = vmatmul.mubr.bf16.gmra.mrb[0].mxu0 %v1845
        %v2054 = vpop.f32.mrb[0].mxu0
        %v2055 = vadd.f32 %v1890, %v2054
        %v2056 = vpop.f32.mrb[0].mxu0
        %v2057 = vpop.f32.mrb[0].mxu0
        %v2058 = vadd.f32 %v1890, %v2057
        %v2059 = vpop.f32.mrb[0].mxu0
        %2060 = vmatprep.mubr.bf16.mxu0 %v1848
        %2061 = vmatmul.mubr.bf16.gmra.mrb[0].mxu0 %v1847
        %v2062 = vpop.f32.mrb[0].mxu0
        %v2063 = vadd.f32 %v1890, %v2062
        %v2064 = vpop.f32.mrb[0].mxu0
        %v2065 = vpop.f32.mrb[0].mxu0
        %v2066 = vadd.f32 %v1890, %v2065
        %v2067 = vpop.f32.mrb[0].mxu0
        %2068 = vmatprep.mubr.bf16.mxu0 %v1850
        %2069 = vmatmul.mubr.bf16.gmra.mrb[0].mxu0 %v1849
        %v2070 = vpop.f32.mrb[0].mxu0
        %v2071 = vadd.f32 %v1890, %v2070
        %v2072 = vpop.f32.mrb[0].mxu0
        %v2073 = vpop.f32.mrb[0].mxu0
        %v2074 = vadd.f32 %v1890, %v2073
        %v2075 = vpop.f32.mrb[0].mxu0
        %2076 = vmatprep.mubr.bf16.mxu0 %v1852
        %2077 = vmatmul.mubr.bf16.gmra.mrb[0].mxu0 %v1851
        %v2078 = vpop.f32.mrb[0].mxu0
        %v2079 = vadd.f32 %v1890, %v2078
        %v2080 = vpop.f32.mrb[0].mxu0
        %v2081 = vpop.f32.mrb[0].mxu0
        %v2082 = vadd.f32 %v1890, %v2081
        %v2083 = vpop.f32.mrb[0].mxu0
        %2084 = vdwg.mxu0
        %v2085 = vadd.f32 %v1338, %v2023
        %v2086 = vadd.f32 %v1339, %v2026
        %v2087 = vadd.f32 %v1340, %v2031
        %v2088 = vadd.f32 %v1341, %v2034
        %v2089 = vadd.f32 %v1342, %v2039
        %v2090 = vadd.f32 %v1343, %v2042
        %v2091 = vadd.f32 %v1344, %v2047
        %v2092 = vadd.f32 %v1345, %v2050
        %v2093 = vadd.f32 %v1346, %v2055
        %v2094 = vadd.f32 %v1347, %v2058
        %v2095 = vadd.f32 %v1348, %v2063
        %v2096 = vadd.f32 %v1349, %v2066
        %v2097 = vadd.f32 %v1350, %v2071
        %v2098 = vadd.f32 %v1351, %v2074
        %v2099 = vadd.f32 %v1352, %v2079
        %v2100 = vadd.f32 %v1353, %v2082
        %2101 = vst [vmem:[%s513] sm:$0xff] %v2085
        %2102 = vst [vmem:[%s513 + $0x8] sm:$0xff] %v2086
        %2103 = vst [vmem:[%s513 + $0x10] sm:$0xff] %v2087
        %2104 = vst [vmem:[%s513 + $0x18] sm:$0xff] %v2088
        %2105 = vst [vmem:[%s513 + $0x20] sm:$0xff] %v2089
        %2106 = vst [vmem:[%s513 + $0x28] sm:$0xff] %v2090
        %2107 = vst [vmem:[%s513 + $0x30] sm:$0xff] %v2091
        %2108 = vst [vmem:[%s513 + $0x38] sm:$0xff] %v2092
        %2109 = vst [vmem:[%s513 + $0x40] sm:$0xff] %v2093
        %2110 = vst [vmem:[%s513 + $0x48] sm:$0xff] %v2094
        %2111 = vst [vmem:[%s513 + $0x50] sm:$0xff] %v2095
        %2112 = vst [vmem:[%s513 + $0x58] sm:$0xff] %v2096
        %2113 = vst [vmem:[%s513 + $0x60] sm:$0xff] %v2097
        %2114 = vst [vmem:[%s513 + $0x68] sm:$0xff] %v2098
        %2115 = vst [vmem:[%s513 + $0x70] sm:$0xff] %v2099
        %2116 = vst [vmem:[%s513 + $0x78] sm:$0xff] %v2100
        %s2117 = sand.u32 %s318, 1
        %s2118 = scalar_lea.sflag [#allocation5], %s2117
        %s2119 = sand.u32 %s318, 1
        %s2120 = smul.addr %s2119, 128
        %s2121 = scalar_lea.vmem [#allocation12], %s2120
        // Predicated region
        $region93: #{tpu_custom_call.1} parent=71 // pred_check
          %p2122 = pneg %p328
        $region94: #{tpu_custom_call.1} parent=71 // pred_check_branch
          %2124 = sbr.rel (%p2122) target = $region96
        $region95: #{tpu_custom_call.1} parent=71 // pred_region
          %s2125 = smul.u32 2, %s32
          %s2127 = ssub.s32 2048, 2048
          %2128 = vsyncadd %s2118, %s2127
          %s2129 = smul.addr %s2125, 8
          %s2130 = smul.addr %s2129, 128
          %s2131 = scalar_lea.hbm %s13, %s2130
          %s2132 = sshll.u32 %s2121, 4
          %s2133 = int_to_ptr.vmem [resolvable:$true] %s2132
          %2138 = dma.vmem_to_hbm [thread:$0]  %s2133, 2048, %s2131, %s2118, 128, 128, 8
        $region96: #{tpu_custom_call.1} parent=71 // pred_fallthru
          _
      $region72: #{tpu_custom_call.1} parent=5 // pred_fallthru
        _
      %p2139 = scmp.le.s32.totalorder 2, %s27
      // Predicated region
      $region97: #{tpu_custom_call.1} parent=5 // pred_check
        %p2140 = pneg %p2139
      $region98: #{tpu_custom_call.1} parent=5 // pred_check_branch
        %2142 = sbr.rel (%p2140) target = $region100
      $region99: #{tpu_custom_call.1} parent=5 // pred_region
        %s2143 = ssub.s32 %s27, 2
        // Predicated region
        $region101: #{tpu_custom_call.1} parent=99 // pred_check
          %p2144 = pneg %p334
        $region102: #{tpu_custom_call.1} parent=99 // pred_check_branch
          %2146 = sbr.rel (%p2144) target = $region104
        $region103: #{tpu_custom_call.1} parent=99 // pred_region
          %s2147 = sand.u32 %s319, 1
          %s2148 = scalar_lea.sflag [#allocation5], %s2147
          %s2149 = sand.u32 %s319, 1
          %s2150 = smul.addr %s2149, 128
          %s2151 = scalar_lea.vmem [#allocation12], %s2150
          %2152 = dma.done %s2148, 2048
        $region104: #{tpu_custom_call.1} parent=99 // pred_fallthru
          _
      $region100: #{tpu_custom_call.1} parent=5 // pred_fallthru
        _
    $region6: #{tpu_custom_call.1} parent=1 // loop_footer
      %s31 = sadd.s32 1, %s27
    $region7: #{tpu_custom_call.1} parent=1 // loop_footer_branch
      %26 = sbr.rel target = $region3
    $region8: #{tpu_custom_call.1} parent=1 // loop_exit
      _
    %2153 = vsyncpa [#allocation4], 1
    %s2154 = scalar_lea.sflag [#allocation4], 1
    %2155 = vsyncpa %s2154, 1
    %2156 = vsyncpa [#allocation7], 1
    %2157 = vsyncpa [#allocation10], 1
    %2158 = vsyncpa [#allocation5], 1
    %s2159 = scalar_lea.sflag [#allocation5], 1
    %2160 = vsyncpa %s2159, 1

</llo_original>
